<compile_context>
chip_gen: v7x
topology: tpu7x:2x2x1
jax: 0.10.0
libtpu: 0.0.40
codegen_flags: <defaults>
</compile_context>

<pallas_src>
import functools

import jax
import jax.numpy as jnp
import numpy as np
from jax.experimental import pallas as pl
from jax.experimental.pallas import tpu as pltpu


# ----------------------------------------------------------------------------
# Fused kernel: projections + attention + softmax + mean + out_proj + LayerNorm
# ----------------------------------------------------------------------------
def _cvaf_kernel(cur_ref, nf_ref, na_ref,
                 wq_ref, bq_ref, wk_ref, bkc_ref, wv_ref, bv_ref,
                 wc_ref, wo_ref, bo_ref, g_ref, beta_ref,
                 out_ref, *, n_neighbors, eps):
    f32 = jnp.float32
    N = n_neighbors
    A, C = out_ref.shape
    inv_n = 1.0 / N

    cur = cur_ref[...]                                               # [A, C]

    # --- query projection (scale already folded into Wq/bq on the host) ------
    q = (jnp.dot(cur, wq_ref[...].astype(f32),
                 preferred_element_type=f32) + bq_ref[...])          # [A, C]

    # --- K / V projections batched over ALL neighbors: [N*A, C] --------------
    nf = nf_ref[...]                                                 # [N*A, C]
    na = na_ref[...]                                                 # [N*A, ctx]
    k = (jnp.dot(nf, wk_ref[...].astype(f32), preferred_element_type=f32)
         + jnp.dot(na, wc_ref[...].astype(f32), preferred_element_type=f32)
         + bkc_ref[...])                                             # bkc = bk + bc
    v = jnp.dot(nf, wv_ref[...].astype(f32),
                preferred_element_type=f32) + bv_ref[...]            # [N*A, C]

    # --- per-neighbor attention (N is tiny & static -> unrolled) -------------
    acc = jnp.zeros((A, C), f32)
    for n in range(N):
        k_n = k[n * A:(n + 1) * A, :]                                # [A, C]
        v_n = v[n * A:(n + 1) * A, :]                                # [A, C]
        s = jax.lax.dot_general(q, k_n, (((1,), (1,)), ((), ())),
                                preferred_element_type=f32)          # [A, A]
        s = s - jnp.max(s, axis=-1, keepdims=True)
        p = jnp.exp(s)
        w = p * pl.reciprocal(jnp.sum(p, axis=-1, keepdims=True), approx=True)
        # TODO(synk): nn.Dropout(0.1) on attention weights / fused features is
        # the identity in eval (inference) mode, so no mask is applied here.
        acc = acc + jnp.dot(w, v_n, preferred_element_type=f32)

    # --- mean over N, out_proj, residual add, LayerNorm -----------------------
    fused = acc * inv_n
    fused = (jnp.dot(fused, wo_ref[...].astype(f32),
                     preferred_element_type=f32) + bo_ref[...])
    x = cur + fused
    mu = jnp.mean(x, axis=-1, keepdims=True)
    xc = x - mu
    var = jnp.mean(xc * xc, axis=-1, keepdims=True)
    y = xc * jax.lax.rsqrt(var + eps)
    out_ref[...] = (y * g_ref[...] + beta_ref[...]).astype(out_ref.dtype)


# ----------------------------------------------------------------------------
# Wrapper (single, grid-less pallas_call for the whole forward pass)
# ----------------------------------------------------------------------------
def cross_vehicle_attention_fuse(current_anchor, neighbor_anchor,
                                 current_features, neighbor_features,
                                 params, *, num_heads=8, eps=1e-5):
    N, A, C = neighbor_features.shape
    ctx = neighbor_anchor.shape[-1]
    scale = float((C // num_heads) ** -0.5)

    bf16 = lambda w: w.astype(jnp.bfloat16)
    row = lambda b: b.reshape(1, -1).astype(jnp.float32)

    args = (
        current_features.astype(jnp.float32),                       # [A, C]
        neighbor_features.reshape(N * A, C).astype(jnp.float32),    # [N*A, C]
        neighbor_anchor.reshape(N * A, ctx).astype(jnp.float32),    # [N*A, ctx]
        bf16(params["wq"] * scale), row(params["bq"] * scale),      # scale folded
        bf16(params["wk"]), row(params["bk"] + params["bc"]),       # bk+bc merged
        bf16(params["wv"]), row(params["bv"]),
        bf16(params["wc"]),
        bf16(params["wo"]), row(params["bo"]),
        row(params["ln_g"]), row(params["ln_b"]),
    )

    vmem = pl.BlockSpec(memory_space=pltpu.MemorySpace.VMEM)
    fused = pl.pallas_call(
        functools.partial(_cvaf_kernel, n_neighbors=N, eps=eps),
        out_shape=jax.ShapeDtypeStruct((A, C), jnp.float32),
        in_specs=[vmem] * len(args),
        out_specs=vmem,
    )(*args)
    return current_anchor, fused


forward = jax.jit(cross_vehicle_attention_fuse,
                  static_argnames=("num_heads", "eps"))


# ----------------------------------------------------------------------------
# Pure-JAX reference (mirrors the PyTorch forward, dropout disabled)
# ----------------------------------------------------------------------------
def reference_forward(current_anchor, neighbor_anchor, current_features,
                      neighbor_features, params, *, num_heads=8, eps=1e-5):
    N, A, C = neighbor_features.shape
    scale = (C // num_heads) ** -0.5
    hp = jax.lax.Precision.HIGHEST
    q = jnp.einsum("ac,cd->ad", current_features, params["wq"], precision=hp) + params["bq"]
    q = jnp.broadcast_to(q[None], (N, A, C))
    k = (jnp.einsum("nac,cd->nad", neighbor_features, params["wk"], precision=hp) + params["bk"]
         + jnp.einsum("nax,xd->nad", neighbor_anchor, params["wc"], precision=hp) + params["bc"])
    v = jnp.einsum("nac,cd->nad", neighbor_features, params["wv"], precision=hp) + params["bv"]
    s = jnp.einsum("nqc,nkc->nqk", q, k, precision=hp) * scale
    w = jax.nn.softmax(s, axis=-1)
    f = jnp.einsum("nqk,nkv->nqv", w, v, precision=hp).mean(axis=0)
    f = jnp.einsum("ac,cd->ad", f, params["wo"], precision=hp) + params["bo"]
    x = current_features + f
    mu = x.mean(-1, keepdims=True)
    var = ((x - mu) ** 2).mean(-1, keepdims=True)
    y = (x - mu) / jnp.sqrt(var + eps) * params["ln_g"] + params["ln_b"]
    return current_anchor, y


# ----------------------------------------------------------------------------
# Parameter construction (weights stored as [in, out] == torch Linear W^T)
# ----------------------------------------------------------------------------
def init_params(key, feature_dim=256, context_dim=8):
    ks = jax.random.split(key, 6)

    def linear(k, fan_in, fan_out):
        kw, kb = jax.random.split(k)
        lim = 1.0 / np.sqrt(fan_in)
        w = jax.random.uniform(kw, (fan_in, fan_out), jnp.float32, -lim, lim)
        b = jax.random.uniform(kb, (fan_out,), jnp.float32, -lim, lim)
        return w, b

    p = {}
    p["wq"], p["bq"] = linear(ks[0], feature_dim, feature_dim)
    p["wk"], p["bk"] = linear(ks[1], feature_dim, feature_dim)
    p["wv"], p["bv"] = linear(ks[2], feature_dim, feature_dim)
    p["wc"], p["bc"] = linear(ks[3], context_dim, feature_dim)
    p["wo"], p["bo"] = linear(ks[4], feature_dim, feature_dim)
    p["ln_g"] = jnp.ones((feature_dim,), jnp.float32)
    p["ln_b"] = jnp.zeros((feature_dim,), jnp.float32)
    # info_gain_proj = nn.Linear(feature_dim, 1) is declared in __init__ but
    # never used by forward(); materialised only for structural fidelity.
    p["w_ig"], p["b_ig"] = linear(ks[5], feature_dim, 1)
    return p


if __name__ == "__main__":
    key = jax.random.PRNGKey(0)
    k1, k2, k3, k4, kp = jax.random.split(key, 5)

    N, A, C, ctx = 2, 16, 256, 8    # neighbors, anchors, feature_dim, context_dim
    current_anchor = jax.random.normal(k1, (A, ctx), jnp.float32)
    neighbor_anchor = jax.random.normal(k2, (N, A, ctx), jnp.float32)
    current_features = jax.random.normal(k3, (A, C), jnp.float32)
    neighbor_features = jax.random.normal(k4, (N, A, C), jnp.float32)
    params = init_params(kp, feature_dim=C, context_dim=ctx)

    anchor_out, fused = forward(current_anchor, neighbor_anchor,
                                current_features, neighbor_features, params)
    jax.block_until_ready((anchor_out, fused))

    assert anchor_out.shape == (A, ctx)
    assert fused.shape == (A, C)

    ref_anchor, ref_fused = reference_forward(
        current_anchor, neighbor_anchor, current_features, neighbor_features, params)
    np.testing.assert_allclose(np.asarray(anchor_out), np.asarray(ref_anchor))
    np.testing.assert_allclose(np.asarray(fused), np.asarray(ref_fused),
                               rtol=2e-2, atol=2e-2)
    print("KERNEL_OK")
</pallas_src>

<mosaic_0001>
module attributes {stable_mosaic.version = 11 : i64} {
  func.func @_cvaf_kernel(%arg0: memref<16x256xf32, #tpu.memory_space<vmem>>, %arg1: memref<32x256xf32, #tpu.memory_space<vmem>>, %arg2: memref<32x8xf32, #tpu.memory_space<vmem>>, %arg3: memref<256x256xbf16, #tpu.memory_space<vmem>>, %arg4: memref<1x256xf32, #tpu.memory_space<vmem>>, %arg5: memref<256x256xbf16, #tpu.memory_space<vmem>>, %arg6: memref<1x256xf32, #tpu.memory_space<vmem>>, %arg7: memref<256x256xbf16, #tpu.memory_space<vmem>>, %arg8: memref<1x256xf32, #tpu.memory_space<vmem>>, %arg9: memref<8x256xbf16, #tpu.memory_space<vmem>>, %arg10: memref<256x256xbf16, #tpu.memory_space<vmem>>, %arg11: memref<1x256xf32, #tpu.memory_space<vmem>>, %arg12: memref<1x256xf32, #tpu.memory_space<vmem>>, %arg13: memref<1x256xf32, #tpu.memory_space<vmem>>, %arg14: memref<16x256xf32, #tpu.memory_space<vmem>>) attributes {dimension_semantics = [], scalar_prefetch = 0 : i64, scratch_operands = 0 : i64, tpu.core_type = #tpu.core_type<tc>} {
    %c0 = arith.constant 0 : index
    %c0_0 = arith.constant 0 : index
    %0 = vector.load %arg0[%c0, %c0_0] : memref<16x256xf32, #tpu.memory_space<vmem>>, vector<16x256xf32>
    %c0_1 = arith.constant 0 : index
    %c0_2 = arith.constant 0 : index
    %1 = vector.load %arg3[%c0_1, %c0_2] : memref<256x256xbf16, #tpu.memory_space<vmem>>, vector<256x256xbf16>
    %2 = arith.extf %1 : vector<256x256xbf16> to vector<256x256xf32>
    %cst = arith.constant dense<0.000000e+00> : vector<16x256xf32>
    %3 = tpu.matmul %0, %2, %cst {dimension_numbers = #tpu.dot_dimension_numbers<[1], [0], [0], [1], [0, 0, 1, 1], [], []>} : vector<16x256xf32>, vector<256x256xf32>, vector<16x256xf32> -> vector<16x256xf32>
    %c0_3 = arith.constant 0 : index
    %c0_4 = arith.constant 0 : index
    %4 = vector.load %arg4[%c0_3, %c0_4] : memref<1x256xf32, #tpu.memory_space<vmem>>, vector<1x256xf32>
    %5 = vector.broadcast %4 : vector<1x256xf32> to vector<16x256xf32>
    %6 = arith.addf %3, %5 : vector<16x256xf32>
    %c0_5 = arith.constant 0 : index
    %c0_6 = arith.constant 0 : index
    %7 = vector.load %arg1[%c0_5, %c0_6] : memref<32x256xf32, #tpu.memory_space<vmem>>, vector<32x256xf32>
    %c0_7 = arith.constant 0 : index
    %c0_8 = arith.constant 0 : index
    %8 = vector.load %arg2[%c0_7, %c0_8] : memref<32x8xf32, #tpu.memory_space<vmem>>, vector<32x8xf32>
    %c0_9 = arith.constant 0 : index
    %c0_10 = arith.constant 0 : index
    %9 = vector.load %arg5[%c0_9, %c0_10] : memref<256x256xbf16, #tpu.memory_space<vmem>>, vector<256x256xbf16>
    %10 = arith.extf %9 : vector<256x256xbf16> to vector<256x256xf32>
    %cst_11 = arith.constant dense<0.000000e+00> : vector<32x256xf32>
    %11 = tpu.matmul %7, %10, %cst_11 {dimension_numbers = #tpu.dot_dimension_numbers<[1], [0], [0], [1], [0, 0, 1, 1], [], []>} : vector<32x256xf32>, vector<256x256xf32>, vector<32x256xf32> -> vector<32x256xf32>
    %c0_12 = arith.constant 0 : index
    %c0_13 = arith.constant 0 : index
    %12 = vector.load %arg9[%c0_12, %c0_13] : memref<8x256xbf16, #tpu.memory_space<vmem>>, vector<8x256xbf16>
    %13 = arith.extf %12 : vector<8x256xbf16> to vector<8x256xf32>
    %cst_14 = arith.constant dense<0.000000e+00> : vector<32x256xf32>
    %14 = tpu.matmul %8, %13, %cst_14 {dimension_numbers = #tpu.dot_dimension_numbers<[1], [0], [0], [1], [0, 0, 1, 1], [], []>} : vector<32x8xf32>, vector<8x256xf32>, vector<32x256xf32> -> vector<32x256xf32>
    %15 = arith.addf %11, %14 : vector<32x256xf32>
    %c0_15 = arith.constant 0 : index
    %c0_16 = arith.constant 0 : index
    %16 = vector.load %arg6[%c0_15, %c0_16] : memref<1x256xf32, #tpu.memory_space<vmem>>, vector<1x256xf32>
    %17 = vector.broadcast %16 : vector<1x256xf32> to vector<32x256xf32>
    %18 = arith.addf %15, %17 : vector<32x256xf32>
    %c0_17 = arith.constant 0 : index
    %c0_18 = arith.constant 0 : index
    %19 = vector.load %arg7[%c0_17, %c0_18] : memref<256x256xbf16, #tpu.memory_space<vmem>>, vector<256x256xbf16>
    %20 = arith.extf %19 : vector<256x256xbf16> to vector<256x256xf32>
    %cst_19 = arith.constant dense<0.000000e+00> : vector<32x256xf32>
    %21 = tpu.matmul %7, %20, %cst_19 {dimension_numbers = #tpu.dot_dimension_numbers<[1], [0], [0], [1], [0, 0, 1, 1], [], []>} : vector<32x256xf32>, vector<256x256xf32>, vector<32x256xf32> -> vector<32x256xf32>
    %c0_20 = arith.constant 0 : index
    %c0_21 = arith.constant 0 : index
    %22 = vector.load %arg8[%c0_20, %c0_21] : memref<1x256xf32, #tpu.memory_space<vmem>>, vector<1x256xf32>
    %23 = vector.broadcast %22 : vector<1x256xf32> to vector<32x256xf32>
    %24 = arith.addf %21, %23 : vector<32x256xf32>
    %cst_22 = arith.constant 0.000000e+00 : f32
    %25 = vector.broadcast %cst_22 : f32 to vector<16x256xf32>
    %26 = vector.extract_strided_slice %18 {offsets = [0, 0], sizes = [16, 256], strides = [1, 1]} : vector<32x256xf32> to vector<16x256xf32>
    %27 = vector.extract_strided_slice %24 {offsets = [0, 0], sizes = [16, 256], strides = [1, 1]} : vector<32x256xf32> to vector<16x256xf32>
    %cst_23 = arith.constant dense<0.000000e+00> : vector<16x16xf32>
    %28 = tpu.matmul %6, %26, %cst_23 {dimension_numbers = #tpu.dot_dimension_numbers<[1], [1], [0], [0], [0, 0, 1, 0], [], []>} : vector<16x256xf32>, vector<16x256xf32>, vector<16x16xf32> -> vector<16x16xf32>
    %cst_24 = arith.constant dense<0xFF800000> : vector<16xf32>
    %29 = vector.multi_reduction <maximumf>, %28, %cst_24 [1] : vector<16x16xf32> to vector<16xf32>
    %30 = vector.shape_cast %29 : vector<16xf32> to vector<16x1xf32>
    %31 = vector.broadcast %30 : vector<16x1xf32> to vector<16x16xf32>
    %32 = arith.subf %28, %31 : vector<16x16xf32>
    %33 = math.exp %32 : vector<16x16xf32>
    %cst_25 = arith.constant dense<0.000000e+00> : vector<16xf32>
    %34 = vector.multi_reduction <add>, %33, %cst_25 [1] : vector<16x16xf32> to vector<16xf32>
    %35 = vector.shape_cast %34 : vector<16xf32> to vector<16x1xf32>
    %36 = tpu.reciprocal %35 {approx = true} : vector<16x1xf32> -> vector<16x1xf32>
    %37 = vector.broadcast %36 : vector<16x1xf32> to vector<16x16xf32>
    %38 = arith.mulf %33, %37 : vector<16x16xf32>
    %cst_26 = arith.constant dense<0.000000e+00> : vector<16x256xf32>
    %39 = tpu.matmul %38, %27, %cst_26 {dimension_numbers = #tpu.dot_dimension_numbers<[1], [0], [0], [1], [0, 0, 1, 1], [], []>} : vector<16x16xf32>, vector<16x256xf32>, vector<16x256xf32> -> vector<16x256xf32>
    %40 = arith.addf %25, %39 : vector<16x256xf32>
    %41 = vector.extract_strided_slice %18 {offsets = [16, 0], sizes = [16, 256], strides = [1, 1]} : vector<32x256xf32> to vector<16x256xf32>
    %42 = vector.extract_strided_slice %24 {offsets = [16, 0], sizes = [16, 256], strides = [1, 1]} : vector<32x256xf32> to vector<16x256xf32>
    %cst_27 = arith.constant dense<0.000000e+00> : vector<16x16xf32>
    %43 = tpu.matmul %6, %41, %cst_27 {dimension_numbers = #tpu.dot_dimension_numbers<[1], [1], [0], [0], [0, 0, 1, 0], [], []>} : vector<16x256xf32>, vector<16x256xf32>, vector<16x16xf32> -> vector<16x16xf32>
    %cst_28 = arith.constant dense<0xFF800000> : vector<16xf32>
    %44 = vector.multi_reduction <maximumf>, %43, %cst_28 [1] : vector<16x16xf32> to vector<16xf32>
    %45 = vector.shape_cast %44 : vector<16xf32> to vector<16x1xf32>
    %46 = vector.broadcast %45 : vector<16x1xf32> to vector<16x16xf32>
    %47 = arith.subf %43, %46 : vector<16x16xf32>
    %48 = math.exp %47 : vector<16x16xf32>
    %cst_29 = arith.constant dense<0.000000e+00> : vector<16xf32>
    %49 = vector.multi_reduction <add>, %48, %cst_29 [1] : vector<16x16xf32> to vector<16xf32>
    %50 = vector.shape_cast %49 : vector<16xf32> to vector<16x1xf32>
    %51 = tpu.reciprocal %50 {approx = true} : vector<16x1xf32> -> vector<16x1xf32>
    %52 = vector.broadcast %51 : vector<16x1xf32> to vector<16x16xf32>
    %53 = arith.mulf %48, %52 : vector<16x16xf32>
    %cst_30 = arith.constant dense<0.000000e+00> : vector<16x256xf32>
    %54 = tpu.matmul %53, %42, %cst_30 {dimension_numbers = #tpu.dot_dimension_numbers<[1], [0], [0], [1], [0, 0, 1, 1], [], []>} : vector<16x16xf32>, vector<16x256xf32>, vector<16x256xf32> -> vector<16x256xf32>
    %55 = arith.addf %40, %54 : vector<16x256xf32>
    %cst_31 = arith.constant 5.000000e-01 : f32
    %56 = vector.broadcast %cst_31 : f32 to vector<16x256xf32>
    %57 = arith.mulf %55, %56 : vector<16x256xf32>
    %c0_32 = arith.constant 0 : index
    %c0_33 = arith.constant 0 : index
    %58 = vector.load %arg10[%c0_32, %c0_33] : memref<256x256xbf16, #tpu.memory_space<vmem>>, vector<256x256xbf16>
    %59 = arith.extf %58 : vector<256x256xbf16> to vector<256x256xf32>
    %cst_34 = arith.constant dense<0.000000e+00> : vector<16x256xf32>
    %60 = tpu.matmul %57, %59, %cst_34 {dimension_numbers = #tpu.dot_dimension_numbers<[1], [0], [0], [1], [0, 0, 1, 1], [], []>} : vector<16x256xf32>, vector<256x256xf32>, vector<16x256xf32> -> vector<16x256xf32>
    %c0_35 = arith.constant 0 : index
    %c0_36 = arith.constant 0 : index
    %61 = vector.load %arg11[%c0_35, %c0_36] : memref<1x256xf32, #tpu.memory_space<vmem>>, vector<1x256xf32>
    %62 = vector.broadcast %61 : vector<1x256xf32> to vector<16x256xf32>
    %63 = arith.addf %60, %62 : vector<16x256xf32>
    %64 = arith.addf %0, %63 : vector<16x256xf32>
    %cst_37 = arith.constant dense<0.000000e+00> : vector<16xf32>
    %65 = vector.multi_reduction <add>, %64, %cst_37 [1] : vector<16x256xf32> to vector<16xf32>
    %66 = vector.shape_cast %65 : vector<16xf32> to vector<16x1xf32>
    %cst_38 = arith.constant 2.560000e+02 : f32
    %67 = vector.broadcast %cst_38 : f32 to vector<16x1xf32>
    %68 = arith.divf %66, %67 : vector<16x1xf32>
    %69 = vector.broadcast %68 : vector<16x1xf32> to vector<16x256xf32>
    %70 = arith.subf %64, %69 : vector<16x256xf32>
    %71 = arith.mulf %70, %70 : vector<16x256xf32>
    %cst_39 = arith.constant dense<0.000000e+00> : vector<16xf32>
    %72 = vector.multi_reduction <add>, %71, %cst_39 [1] : vector<16x256xf32> to vector<16xf32>
    %73 = vector.shape_cast %72 : vector<16xf32> to vector<16x1xf32>
    %cst_40 = arith.constant 2.560000e+02 : f32
    %74 = vector.broadcast %cst_40 : f32 to vector<16x1xf32>
    %75 = arith.divf %73, %74 : vector<16x1xf32>
    %cst_41 = arith.constant 9.99999974E-6 : f32
    %76 = vector.broadcast %cst_41 : f32 to vector<16x1xf32>
    %77 = arith.addf %75, %76 : vector<16x1xf32>
    %78 = math.rsqrt %77 : vector<16x1xf32>
    %79 = vector.broadcast %78 : vector<16x1xf32> to vector<16x256xf32>
    %80 = arith.mulf %70, %79 : vector<16x256xf32>
    %c0_42 = arith.constant 0 : index
    %c0_43 = arith.constant 0 : index
    %81 = vector.load %arg12[%c0_42, %c0_43] : memref<1x256xf32, #tpu.memory_space<vmem>>, vector<1x256xf32>
    %82 = vector.broadcast %81 : vector<1x256xf32> to vector<16x256xf32>
    %83 = arith.mulf %80, %82 : vector<16x256xf32>
    %c0_44 = arith.constant 0 : index
    %c0_45 = arith.constant 0 : index
    %84 = vector.load %arg13[%c0_44, %c0_45] : memref<1x256xf32, #tpu.memory_space<vmem>>, vector<1x256xf32>
    %85 = vector.broadcast %84 : vector<1x256xf32> to vector<16x256xf32>
    %86 = arith.addf %83, %85 : vector<16x256xf32>
    %c0_46 = arith.constant 0 : index
    %c0_47 = arith.constant 0 : index
    %87 = vector.load %arg14[%c0_46, %c0_47] : memref<16x256xf32, #tpu.memory_space<vmem>>, vector<16x256xf32>
    tpu.vector_store %arg14[%c0_46, %c0_47], %86 {strides = array<i32>} : memref<16x256xf32, #tpu.memory_space<vmem>>, vector<16x256xf32>,
    return
  }
}

</mosaic_0001>

<llo_original>
// kernel: cross_vehicle_attention_fuse.1
$region0: #{cross_vehicle_attention_fuse.1}
  #allocation0 [shape = 'u32[]', space=smem, size = 0x4, offset = 0x4, fixed_abs, tag = 'smem constant byte address 0x4 - core index']
  #allocation1 [shape = 'u32[144,128]{1,0:T(1,128)}', space=vmem, size = 0x12000, scoped, tag = 'internal scratch']
  %s0 = inlined_call_operand.vmem [shape: f32[16,256], index: 0, kind: input, shape index: {}]
  %s1 = inlined_call_operand.vmem [shape: f32[32,256], index: 1, kind: input, shape index: {}]
  %s2 = inlined_call_operand.vmem [shape: f32[32,8], index: 2, kind: input, shape index: {}]
  %s3 = inlined_call_operand.vmem [shape: bf16[256,256], index: 3, kind: input, shape index: {}]
  %s4 = inlined_call_operand.vmem [shape: f32[1,256], index: 4, kind: input, shape index: {}]
  %s5 = inlined_call_operand.vmem [shape: bf16[256,256], index: 5, kind: input, shape index: {}]
  %s6 = inlined_call_operand.vmem [shape: f32[1,256], index: 6, kind: input, shape index: {}]
  %s7 = inlined_call_operand.vmem [shape: bf16[256,256], index: 7, kind: input, shape index: {}]
  %s8 = inlined_call_operand.vmem [shape: f32[1,256], index: 8, kind: input, shape index: {}]
  %s9 = inlined_call_operand.vmem [shape: bf16[8,256], index: 9, kind: input, shape index: {}]
  %s10 = inlined_call_operand.vmem [shape: bf16[256,256], index: 10, kind: input, shape index: {}]
  %s11 = inlined_call_operand.vmem [shape: f32[1,256], index: 11, kind: input, shape index: {}]
  %s12 = inlined_call_operand.vmem [shape: f32[1,256], index: 12, kind: input, shape index: {}]
  %s13 = inlined_call_operand.vmem [shape: f32[1,256], index: 13, kind: input, shape index: {}]
  %s14 = inlined_call_operand.hbm [shape: f32[16,256], index: 14, kind: output, shape index: {}]
  %s15 = sld [smem:[#allocation0]]
  $region66: #{cross_vehicle_attention_fuse.1} parent=0
    _
  %s17 = ssub.s32 1, %s15
  %s18 = scalar_select 0, %s17, %s15
  $region1: #{cross_vehicle_attention_fuse.1} parent=0
    #allocation2 [shape = 'u8[16384]{0}', space=vmem, size = 0x4000, scoped, tag = 'output window, operand 0, single buffered']
    #allocation3 [shape = 's32[1]{0}', space=sflag, size = 0x4, scoped, tag = 'scoped memory for cross_vehicle_attention_fuse.1']
    %19 = vsyncpa [#allocation3], 0
    // Predicated region
    $region2: #{cross_vehicle_attention_fuse.1} parent=1 // pred_check
      _
    $region3: #{cross_vehicle_attention_fuse.1} parent=1 // pred_check_branch
      %21 = sbr.rel (0) target = $region5
    $region4: #{cross_vehicle_attention_fuse.1} parent=1 // pred_region
      _
    $region5: #{cross_vehicle_attention_fuse.1} parent=1 // pred_fallthru
      _
    // Predicated region
    $region6: #{cross_vehicle_attention_fuse.1} parent=1 // pred_check
      _
    $region7: #{cross_vehicle_attention_fuse.1} parent=1 // pred_check_branch
      %23 = sbr.rel (0) target = $region9
    $region8: #{cross_vehicle_attention_fuse.1} parent=1 // pred_region
      _
    $region9: #{cross_vehicle_attention_fuse.1} parent=1 // pred_fallthru
      _
    // Predicated region
    $region10: #{cross_vehicle_attention_fuse.1} parent=1 // pred_check
      _
    $region11: #{cross_vehicle_attention_fuse.1} parent=1 // pred_check_branch
      %25 = sbr.rel (0) target = $region13
    $region12: #{cross_vehicle_attention_fuse.1} parent=1 // pred_region
      _
    $region13: #{cross_vehicle_attention_fuse.1} parent=1 // pred_fallthru
      _
    // Predicated region
    $region14: #{cross_vehicle_attention_fuse.1} parent=1 // pred_check
      _
    $region15: #{cross_vehicle_attention_fuse.1} parent=1 // pred_check_branch
      %27 = sbr.rel (0) target = $region17
    $region16: #{cross_vehicle_attention_fuse.1} parent=1 // pred_region
      _
    $region17: #{cross_vehicle_attention_fuse.1} parent=1 // pred_fallthru
      _
    // Predicated region
    $region18: #{cross_vehicle_attention_fuse.1} parent=1 // pred_check
      _
    $region19: #{cross_vehicle_attention_fuse.1} parent=1 // pred_check_branch
      %29 = sbr.rel (0) target = $region21
    $region20: #{cross_vehicle_attention_fuse.1} parent=1 // pred_region
      _
    $region21: #{cross_vehicle_attention_fuse.1} parent=1 // pred_fallthru
      _
    // Predicated region
    $region22: #{cross_vehicle_attention_fuse.1} parent=1 // pred_check
      _
    $region23: #{cross_vehicle_attention_fuse.1} parent=1 // pred_check_branch
      %31 = sbr.rel (0) target = $region25
    $region24: #{cross_vehicle_attention_fuse.1} parent=1 // pred_region
      _
    $region25: #{cross_vehicle_attention_fuse.1} parent=1 // pred_fallthru
      _
    // Predicated region
    $region26: #{cross_vehicle_attention_fuse.1} parent=1 // pred_check
      _
    $region27: #{cross_vehicle_attention_fuse.1} parent=1 // pred_check_branch
      %33 = sbr.rel (0) target = $region29
    $region28: #{cross_vehicle_attention_fuse.1} parent=1 // pred_region
      _
    $region29: #{cross_vehicle_attention_fuse.1} parent=1 // pred_fallthru
      _
    // Predicated region
    $region30: #{cross_vehicle_attention_fuse.1} parent=1 // pred_check
      _
    $region31: #{cross_vehicle_attention_fuse.1} parent=1 // pred_check_branch
      %35 = sbr.rel (0) target = $region33
    $region32: #{cross_vehicle_attention_fuse.1} parent=1 // pred_region
      _
    $region33: #{cross_vehicle_attention_fuse.1} parent=1 // pred_fallthru
      _
    // Predicated region
    $region34: #{cross_vehicle_attention_fuse.1} parent=1 // pred_check
      _
    $region35: #{cross_vehicle_attention_fuse.1} parent=1 // pred_check_branch
      %37 = sbr.rel (0) target = $region37
    $region36: #{cross_vehicle_attention_fuse.1} parent=1 // pred_region
      _
    $region37: #{cross_vehicle_attention_fuse.1} parent=1 // pred_fallthru
      _
    // Predicated region
    $region38: #{cross_vehicle_attention_fuse.1} parent=1 // pred_check
      _
    $region39: #{cross_vehicle_attention_fuse.1} parent=1 // pred_check_branch
      %39 = sbr.rel (0) target = $region41
    $region40: #{cross_vehicle_attention_fuse.1} parent=1 // pred_region
      _
    $region41: #{cross_vehicle_attention_fuse.1} parent=1 // pred_fallthru
      _
    // Predicated region
    $region42: #{cross_vehicle_attention_fuse.1} parent=1 // pred_check
      _
    $region43: #{cross_vehicle_attention_fuse.1} parent=1 // pred_check_branch
      %41 = sbr.rel (0) target = $region45
    $region44: #{cross_vehicle_attention_fuse.1} parent=1 // pred_region
      _
    $region45: #{cross_vehicle_attention_fuse.1} parent=1 // pred_fallthru
      _
    // Predicated region
    $region46: #{cross_vehicle_attention_fuse.1} parent=1 // pred_check
      _
    $region47: #{cross_vehicle_attention_fuse.1} parent=1 // pred_check_branch
      %43 = sbr.rel (0) target = $region49
    $region48: #{cross_vehicle_attention_fuse.1} parent=1 // pred_region
      _
    $region49: #{cross_vehicle_attention_fuse.1} parent=1 // pred_fallthru
      _
    // Predicated region
    $region50: #{cross_vehicle_attention_fuse.1} parent=1 // pred_check
      _
    $region51: #{cross_vehicle_attention_fuse.1} parent=1 // pred_check_branch
      %45 = sbr.rel (0) target = $region53
    $region52: #{cross_vehicle_attention_fuse.1} parent=1 // pred_region
      _
    $region53: #{cross_vehicle_attention_fuse.1} parent=1 // pred_fallthru
      _
    // Predicated region
    $region54: #{cross_vehicle_attention_fuse.1} parent=1 // pred_check
      _
    $region55: #{cross_vehicle_attention_fuse.1} parent=1 // pred_check_branch
      %47 = sbr.rel (0) target = $region57
    $region56: #{cross_vehicle_attention_fuse.1} parent=1 // pred_region
      _
    $region57: #{cross_vehicle_attention_fuse.1} parent=1 // pred_fallthru
      _
    %v48 = vld [vmem:[%s0] sm:$0xff]
    %v49 = vld [vmem:[%s0 + $0x8] sm:$0xff]
    %v50 = vld [vmem:[%s0 + $0x10] sm:$0xff]
    %v51 = vld [vmem:[%s0 + $0x18] sm:$0xff]
    %v52 = vld [vmem:[%s3] sm:$0xff]
    %v53 = vld [vmem:[%s3 + $0x8] sm:$0xff]
    %v54 = vld [vmem:[%s3 + $0x10] sm:$0xff]
    %v55 = vld [vmem:[%s3 + $0x18] sm:$0xff]
    %v56 = vld [vmem:[%s3 + $0x20] sm:$0xff]
    %v57 = vld [vmem:[%s3 + $0x28] sm:$0xff]
    %v58 = vld [vmem:[%s3 + $0x30] sm:$0xff]
    %v59 = vld [vmem:[%s3 + $0x38] sm:$0xff]
    %v60 = vld [vmem:[%s3 + $0x40] sm:$0xff]
    %v61 = vld [vmem:[%s3 + $0x48] sm:$0xff]
    %v62 = vld [vmem:[%s3 + $0x50] sm:$0xff]
    %v63 = vld [vmem:[%s3 + $0x58] sm:$0xff]
    %v64 = vld [vmem:[%s3 + $0x60] sm:$0xff]
    %v65 = vld [vmem:[%s3 + $0x68] sm:$0xff]
    %v66 = vld [vmem:[%s3 + $0x70] sm:$0xff]
    %v67 = vld [vmem:[%s3 + $0x78] sm:$0xff]
    %v68 = vld [vmem:[%s3 + $0x80] sm:$0xff]
    %v69 = vld [vmem:[%s3 + $0x88] sm:$0xff]
    %v70 = vld [vmem:[%s3 + $0x90] sm:$0xff]
    %v71 = vld [vmem:[%s3 + $0x98] sm:$0xff]
    %v72 = vld [vmem:[%s3 + $0xa0] sm:$0xff]
    %v73 = vld [vmem:[%s3 + $0xa8] sm:$0xff]
    %v74 = vld [vmem:[%s3 + $0xb0] sm:$0xff]
    %v75 = vld [vmem:[%s3 + $0xb8] sm:$0xff]
    %v76 = vld [vmem:[%s3 + $0xc0] sm:$0xff]
    %v77 = vld [vmem:[%s3 + $0xc8] sm:$0xff]
    %v78 = vld [vmem:[%s3 + $0xd0] sm:$0xff]
    %v79 = vld [vmem:[%s3 + $0xd8] sm:$0xff]
    %v80 = vld [vmem:[%s3 + $0xe0] sm:$0xff]
    %v81 = vld [vmem:[%s3 + $0xe8] sm:$0xff]
    %v82 = vld [vmem:[%s3 + $0xf0] sm:$0xff]
    %v83 = vld [vmem:[%s3 + $0xf8] sm:$0xff]
    %v84 = vunpack.c.l.bf16 %v52
    %v85 = vunpack.c.h.bf16 %v52
    %v86 = vunpack.c.l.bf16 %v53
    %v87 = vunpack.c.h.bf16 %v53
    %v88 = vunpack.c.l.bf16 %v54
    %v89 = vunpack.c.h.bf16 %v54
    %v90 = vunpack.c.l.bf16 %v55
    %v91 = vunpack.c.h.bf16 %v55
    %v92 = vunpack.c.l.bf16 %v56
    %v93 = vunpack.c.h.bf16 %v56
    %v94 = vunpack.c.l.bf16 %v57
    %v95 = vunpack.c.h.bf16 %v57
    %v96 = vunpack.c.l.bf16 %v58
    %v97 = vunpack.c.h.bf16 %v58
    %v98 = vunpack.c.l.bf16 %v59
    %v99 = vunpack.c.h.bf16 %v59
    %v100 = vunpack.c.l.bf16 %v60
    %v101 = vunpack.c.h.bf16 %v60
    %v102 = vunpack.c.l.bf16 %v61
    %v103 = vunpack.c.h.bf16 %v61
    %v104 = vunpack.c.l.bf16 %v62
    %v105 = vunpack.c.h.bf16 %v62
    %v106 = vunpack.c.l.bf16 %v63
    %v107 = vunpack.c.h.bf16 %v63
    %v108 = vunpack.c.l.bf16 %v64
    %v109 = vunpack.c.h.bf16 %v64
    %v110 = vunpack.c.l.bf16 %v65
    %v111 = vunpack.c.h.bf16 %v65
    %v112 = vunpack.c.l.bf16 %v66
    %v113 = vunpack.c.h.bf16 %v66
    %v114 = vunpack.c.l.bf16 %v67
    %v115 = vunpack.c.h.bf16 %v67
    %v116 = vunpack.c.l.bf16 %v68
    %v117 = vunpack.c.h.bf16 %v68
    %v118 = vunpack.c.l.bf16 %v69
    %v119 = vunpack.c.h.bf16 %v69
    %v120 = vunpack.c.l.bf16 %v70
    %v121 = vunpack.c.h.bf16 %v70
    %v122 = vunpack.c.l.bf16 %v71
    %v123 = vunpack.c.h.bf16 %v71
    %v124 = vunpack.c.l.bf16 %v72
    %v125 = vunpack.c.h.bf16 %v72
    %v126 = vunpack.c.l.bf16 %v73
    %v127 = vunpack.c.h.bf16 %v73
    %v128 = vunpack.c.l.bf16 %v74
    %v129 = vunpack.c.h.bf16 %v74
    %v130 = vunpack.c.l.bf16 %v75
    %v131 = vunpack.c.h.bf16 %v75
    %v132 = vunpack.c.l.bf16 %v76
    %v133 = vunpack.c.h.bf16 %v76
    %v134 = vunpack.c.l.bf16 %v77
    %v135 = vunpack.c.h.bf16 %v77
    %v136 = vunpack.c.l.bf16 %v78
    %v137 = vunpack.c.h.bf16 %v78
    %v138 = vunpack.c.l.bf16 %v79
    %v139 = vunpack.c.h.bf16 %v79
    %v140 = vunpack.c.l.bf16 %v80
    %v141 = vunpack.c.h.bf16 %v80
    %v142 = vunpack.c.l.bf16 %v81
    %v143 = vunpack.c.h.bf16 %v81
    %v144 = vunpack.c.l.bf16 %v82
    %v145 = vunpack.c.h.bf16 %v82
    %v146 = vunpack.c.l.bf16 %v83
    %v147 = vunpack.c.h.bf16 %v83
    %v148 = vld [vmem:[%s4] sm:$0x3]
    %v150 = vlaneseq
    %v151 = vshrl.u32 %v150, 7
    %v152 = vsub.s32 0, %v151
    %v153 = vrot.slane %v148, %v152
    %v154 = vlaneseq
    %v155 = vshrl.u32 %v154, 7
    %v156 = vsub.s32 1, %v155
    %v157 = vrot.slane %v148, %v156
    %160 = vmatprep.subr.mxu0 %v85
    %161 = vmatpush1.msra.mxu0 %v84
    %162 = vmatprep.subr.mxu0 %v87
    %163 = vmatpush1.msra.mxu0 %v86
    %164 = vmatprep.subr.mxu0 %v89
    %165 = vmatpush1.msra.mxu0 %v88
    %166 = vmatprep.subr.mxu0 %v91
    %167 = vmatpush1.msra.mxu0 %v90
    %168 = vmatprep.subr.mxu0 %v93
    %169 = vmatpush1.msra.mxu0 %v92
    %170 = vmatprep.subr.mxu0 %v95
    %171 = vmatpush1.msra.mxu0 %v94
    %172 = vmatprep.subr.mxu0 %v97
    %173 = vmatpush1.msra.mxu0 %v96
    %174 = vmatprep.subr.mxu0 %v99
    %175 = vmatpush1.msra.mxu0 %v98
    %176 = vmatprep.subr.mxu0 %v101
    %177 = vmatpush1.msra.mxu0 %v100
    %178 = vmatprep.subr.mxu0 %v103
    %179 = vmatpush1.msra.mxu0 %v102
    %180 = vmatprep.subr.mxu0 %v105
    %181 = vmatpush1.msra.mxu0 %v104
    %182 = vmatprep.subr.mxu0 %v107
    %183 = vmatpush1.msra.mxu0 %v106
    %184 = vmatprep.subr.mxu0 %v109
    %185 = vmatpush1.msra.mxu0 %v108
    %186 = vmatprep.subr.mxu0 %v111
    %187 = vmatpush1.msra.mxu0 %v110
    %188 = vmatprep.subr.mxu0 %v113
    %189 = vmatpush1.msra.mxu0 %v112
    %190 = vmatprep.subr.mxu0 %v115
    %191 = vmatpush1.msra.mxu0 %v114
    %192 = vmatprep.subr.mxu0 %v117
    %193 = vmatpush1.msra.mxu0 %v116
    %194 = vmatprep.subr.mxu0 %v119
    %195 = vmatpush1.msra.mxu0 %v118
    %196 = vmatprep.subr.mxu0 %v121
    %197 = vmatpush1.msra.mxu0 %v120
    %198 = vmatprep.subr.mxu0 %v123
    %199 = vmatpush1.msra.mxu0 %v122
    %200 = vmatprep.subr.mxu0 %v125
    %201 = vmatpush1.msra.mxu0 %v124
    %202 = vmatprep.subr.mxu0 %v127
    %203 = vmatpush1.msra.mxu0 %v126
    %204 = vmatprep.subr.mxu0 %v129
    %205 = vmatpush1.msra.mxu0 %v128
    %206 = vmatprep.subr.mxu0 %v131
    %207 = vmatpush1.msra.mxu0 %v130
    %208 = vmatprep.subr.mxu0 %v133
    %209 = vmatpush1.msra.mxu0 %v132
    %210 = vmatprep.subr.mxu0 %v135
    %211 = vmatpush1.msra.mxu0 %v134
    %212 = vmatprep.subr.mxu0 %v137
    %213 = vmatpush1.msra.mxu0 %v136
    %214 = vmatprep.subr.mxu0 %v139
    %215 = vmatpush1.msra.mxu0 %v138
    %216 = vmatprep.subr.mxu0 %v141
    %217 = vmatpush1.msra.mxu0 %v140
    %218 = vmatprep.subr.mxu0 %v143
    %219 = vmatpush1.msra.mxu0 %v142
    %220 = vmatprep.subr.mxu0 %v145
    %221 = vmatpush1.msra.mxu0 %v144
    %222 = vmatprep.subr.mxu0 %v147
    %223 = vmatpush1.msra.mxu0 %v146
    %224 = vmatprep.mubr.f32.mxu0 %v49
    %225 = vmatmul.mubr.f32.gmra.mrb[0].mxu0 %v48
    %v226 = vpop.f32.mrb[0].mxu0
    %v227 = vadd.f32 %v153, %v226
    %v228 = vpop.f32.mrb[0].mxu0
    %v229 = vadd.f32 %v157, %v228
    %230 = vmatprep.mubr.f32.mxu0 %v51
    %231 = vmatmul.mubr.f32.gmra.mrb[0].mxu0 %v50
    %v232 = vpop.f32.mrb[0].mxu0
    %v233 = vadd.f32 %v153, %v232
    %v234 = vpop.f32.mrb[0].mxu0
    %v235 = vadd.f32 %v157, %v234
    %236 = vdwg.mxu0
    %v237 = vld [vmem:[%s1] sm:$0xff]
    %v238 = vld [vmem:[%s1 + $0x8] sm:$0xff]
    %v239 = vld [vmem:[%s1 + $0x10] sm:$0xff]
    %v240 = vld [vmem:[%s1 + $0x18] sm:$0xff]
    %v241 = vld [vmem:[%s1 + $0x20] sm:$0xff]
    %v242 = vld [vmem:[%s1 + $0x28] sm:$0xff]
    %v243 = vld [vmem:[%s1 + $0x30] sm:$0xff]
    %v244 = vld [vmem:[%s1 + $0x38] sm:$0xff]
    %v245 = vld [vmem:[%s2] sm:$0xff]
    %v246 = vld [vmem:[%s2 + $0x8] sm:$0xff]
    %v247 = vld [vmem:[%s2 + $0x10] sm:$0xff]
    %v248 = vld [vmem:[%s2 + $0x18] sm:$0xff]
    %v249 = vld [vmem:[%s5] sm:$0xff]
    %v250 = vld [vmem:[%s5 + $0x8] sm:$0xff]
    %v251 = vld [vmem:[%s5 + $0x10] sm:$0xff]
    %v252 = vld [vmem:[%s5 + $0x18] sm:$0xff]
    %v253 = vld [vmem:[%s5 + $0x20] sm:$0xff]
    %v254 = vld [vmem:[%s5 + $0x28] sm:$0xff]
    %v255 = vld [vmem:[%s5 + $0x30] sm:$0xff]
    %v256 = vld [vmem:[%s5 + $0x38] sm:$0xff]
    %v257 = vld [vmem:[%s5 + $0x40] sm:$0xff]
    %v258 = vld [vmem:[%s5 + $0x48] sm:$0xff]
    %v259 = vld [vmem:[%s5 + $0x50] sm:$0xff]
    %v260 = vld [vmem:[%s5 + $0x58] sm:$0xff]
    %v261 = vld [vmem:[%s5 + $0x60] sm:$0xff]
    %v262 = vld [vmem:[%s5 + $0x68] sm:$0xff]
    %v263 = vld [vmem:[%s5 + $0x70] sm:$0xff]
    %v264 = vld [vmem:[%s5 + $0x78] sm:$0xff]
    %v265 = vld [vmem:[%s5 + $0x80] sm:$0xff]
    %v266 = vld [vmem:[%s5 + $0x88] sm:$0xff]
    %v267 = vld [vmem:[%s5 + $0x90] sm:$0xff]
    %v268 = vld [vmem:[%s5 + $0x98] sm:$0xff]
    %v269 = vld [vmem:[%s5 + $0xa0] sm:$0xff]
    %v270 = vld [vmem:[%s5 + $0xa8] sm:$0xff]
    %v271 = vld [vmem:[%s5 + $0xb0] sm:$0xff]
    %v272 = vld [vmem:[%s5 + $0xb8] sm:$0xff]
    %v273 = vld [vmem:[%s5 + $0xc0] sm:$0xff]
    %v274 = vld [vmem:[%s5 + $0xc8] sm:$0xff]
    %v275 = vld [vmem:[%s5 + $0xd0] sm:$0xff]
    %v276 = vld [vmem:[%s5 + $0xd8] sm:$0xff]
    %v277 = vld [vmem:[%s5 + $0xe0] sm:$0xff]
    %v278 = vld [vmem:[%s5 + $0xe8] sm:$0xff]
    %v279 = vld [vmem:[%s5 + $0xf0] sm:$0xff]
    %v280 = vld [vmem:[%s5 + $0xf8] sm:$0xff]
    %v281 = vunpack.c.l.bf16 %v249
    %v282 = vunpack.c.h.bf16 %v249
    %v283 = vunpack.c.l.bf16 %v250
    %v284 = vunpack.c.h.bf16 %v250
    %v285 = vunpack.c.l.bf16 %v251
    %v286 = vunpack.c.h.bf16 %v251
    %v287 = vunpack.c.l.bf16 %v252
    %v288 = vunpack.c.h.bf16 %v252
    %v289 = vunpack.c.l.bf16 %v253
    %v290 = vunpack.c.h.bf16 %v253
    %v291 = vunpack.c.l.bf16 %v254
    %v292 = vunpack.c.h.bf16 %v254
    %v293 = vunpack.c.l.bf16 %v255
    %v294 = vunpack.c.h.bf16 %v255
    %v295 = vunpack.c.l.bf16 %v256
    %v296 = vunpack.c.h.bf16 %v256
    %v297 = vunpack.c.l.bf16 %v257
    %v298 = vunpack.c.h.bf16 %v257
    %v299 = vunpack.c.l.bf16 %v258
    %v300 = vunpack.c.h.bf16 %v258
    %v301 = vunpack.c.l.bf16 %v259
    %v302 = vunpack.c.h.bf16 %v259
    %v303 = vunpack.c.l.bf16 %v260
    %v304 = vunpack.c.h.bf16 %v260
    %v305 = vunpack.c.l.bf16 %v261
    %v306 = vunpack.c.h.bf16 %v261
    %v307 = vunpack.c.l.bf16 %v262
    %v308 = vunpack.c.h.bf16 %v262
    %v309 = vunpack.c.l.bf16 %v263
    %v310 = vunpack.c.h.bf16 %v263
    %v311 = vunpack.c.l.bf16 %v264
    %v312 = vunpack.c.h.bf16 %v264
    %v313 = vunpack.c.l.bf16 %v265
    %v314 = vunpack.c.h.bf16 %v265
    %v315 = vunpack.c.l.bf16 %v266
    %v316 = vunpack.c.h.bf16 %v266
    %v317 = vunpack.c.l.bf16 %v267
    %v318 = vunpack.c.h.bf16 %v267
    %v319 = vunpack.c.l.bf16 %v268
    %v320 = vunpack.c.h.bf16 %v268
    %v321 = vunpack.c.l.bf16 %v269
    %v322 = vunpack.c.h.bf16 %v269
    %v323 = vunpack.c.l.bf16 %v270
    %v324 = vunpack.c.h.bf16 %v270
    %v325 = vunpack.c.l.bf16 %v271
    %v326 = vunpack.c.h.bf16 %v271
    %v327 = vunpack.c.l.bf16 %v272
    %v328 = vunpack.c.h.bf16 %v272
    %v329 = vunpack.c.l.bf16 %v273
    %v330 = vunpack.c.h.bf16 %v273
    %v331 = vunpack.c.l.bf16 %v274
    %v332 = vunpack.c.h.bf16 %v274
    %v333 = vunpack.c.l.bf16 %v275
    %v334 = vunpack.c.h.bf16 %v275
    %v335 = vunpack.c.l.bf16 %v276
    %v336 = vunpack.c.h.bf16 %v276
    %v337 = vunpack.c.l.bf16 %v277
    %v338 = vunpack.c.h.bf16 %v277
    %v339 = vunpack.c.l.bf16 %v278
    %v340 = vunpack.c.h.bf16 %v278
    %v341 = vunpack.c.l.bf16 %v279
    %v342 = vunpack.c.h.bf16 %v279
    %v343 = vunpack.c.l.bf16 %v280
    %v344 = vunpack.c.h.bf16 %v280
    %v345 = vld [vmem:[%s9] sm:$0xff]
    %v346 = vunpack.c.l.bf16 %v345
    %v347 = vunpack.c.h.bf16 %v345
    %vm348 = vcmask 64512
    %v350 = vsel %vm348, %v245, 0
    %v353 = vsel %vm348, %v246, 0
    %v356 = vsel %vm348, %v247, 0
    %v359 = vsel %vm348, %v248, 0
    %361 = vmatprep.subr.mxu0 %v347
    %362 = vmatpush1.msra.mxu0 %v346
    %363 = vmatprep.subr.mxu0 0.0
    %364 = vmatpush1.msra.mxu0 0.0
    %365 = vmatprep.subr.mxu0 0.0
    %366 = vmatpush1.msra.mxu0 0.0
    %367 = vmatprep.subr.mxu0 0.0
    %368 = vmatpush1.msra.mxu0 0.0
    %369 = vmatprep.subr.mxu0 0.0
    %370 = vmatpush1.msra.mxu0 0.0
    %371 = vmatprep.subr.mxu0 0.0
    %372 = vmatpush1.msra.mxu0 0.0
    %373 = vmatprep.subr.mxu0 0.0
    %374 = vmatpush1.msra.mxu0 0.0
    %375 = vmatprep.subr.mxu0 0.0
    %376 = vmatpush1.msra.mxu0 0.0
    %377 = vmatprep.subr.mxu0 0.0
    %378 = vmatpush1.msra.mxu0 0.0
    %379 = vmatprep.subr.mxu0 0.0
    %380 = vmatpush1.msra.mxu0 0.0
    %381 = vmatprep.subr.mxu0 0.0
    %382 = vmatpush1.msra.mxu0 0.0
    %383 = vmatprep.subr.mxu0 0.0
    %384 = vmatpush1.msra.mxu0 0.0
    %385 = vmatprep.subr.mxu0 0.0
    %386 = vmatpush1.msra.mxu0 0.0
    %387 = vmatprep.subr.mxu0 0.0
    %388 = vmatpush1.msra.mxu0 0.0
    %389 = vmatprep.subr.mxu0 0.0
    %390 = vmatpush1.msra.mxu0 0.0
    %391 = vmatprep.subr.mxu0 0.0
    %392 = vmatpush1.msra.mxu0 0.0
    %393 = vmatprep.subr.mxu0 0.0
    %394 = vmatpush1.msra.mxu0 0.0
    %395 = vmatprep.subr.mxu0 0.0
    %396 = vmatpush1.msra.mxu0 0.0
    %397 = vmatprep.subr.mxu0 0.0
    %398 = vmatpush1.msra.mxu0 0.0
    %399 = vmatprep.subr.mxu0 0.0
    %400 = vmatpush1.msra.mxu0 0.0
    %401 = vmatprep.subr.mxu0 0.0
    %402 = vmatpush1.msra.mxu0 0.0
    %403 = vmatprep.subr.mxu0 0.0
    %404 = vmatpush1.msra.mxu0 0.0
    %405 = vmatprep.subr.mxu0 0.0
    %406 = vmatpush1.msra.mxu0 0.0
    %407 = vmatprep.subr.mxu0 0.0
    %408 = vmatpush1.msra.mxu0 0.0
    %409 = vmatprep.subr.mxu0 0.0
    %410 = vmatpush1.msra.mxu0 0.0
    %411 = vmatprep.subr.mxu0 0.0
    %412 = vmatpush1.msra.mxu0 0.0
    %413 = vmatprep.subr.mxu0 0.0
    %414 = vmatpush1.msra.mxu0 0.0
    %415 = vmatprep.subr.mxu0 0.0
    %416 = vmatpush1.msra.mxu0 0.0
    %417 = vmatprep.subr.mxu0 0.0
    %418 = vmatpush1.msra.mxu0 0.0
    %419 = vmatprep.subr.mxu0 0.0
    %420 = vmatpush1.msra.mxu0 0.0
    %421 = vmatprep.subr.mxu0 0.0
    %422 = vmatpush1.msra.mxu0 0.0
    %423 = vmatprep.subr.mxu0 0.0
    %424 = vmatpush1.msra.mxu0 0.0
    %425 = vmatprep.mubr.f32.mxu0 0.0
    %426 = vmatmul.mubr.f32.gmra.mrb[0].mxu0 %v350
    %v427 = vpop.f32.mrb[0].mxu0
    %v428 = vadd.f32 0.0, %v427
    %v429 = vpop.f32.mrb[0].mxu0
    %v430 = vadd.f32 0.0, %v429
    %431 = vmatprep.mubr.f32.mxu0 0.0
    %432 = vmatmul.mubr.f32.gmra.mrb[0].mxu0 %v353
    %v433 = vpop.f32.mrb[0].mxu0
    %v434 = vadd.f32 0.0, %v433
    %v435 = vpop.f32.mrb[0].mxu0
    %v436 = vadd.f32 0.0, %v435
    %437 = vmatprep.mubr.f32.mxu0 0.0
    %438 = vmatmul.mubr.f32.gmra.mrb[0].mxu0 %v356
    %v439 = vpop.f32.mrb[0].mxu0
    %v440 = vadd.f32 0.0, %v439
    %v441 = vpop.f32.mrb[0].mxu0
    %v442 = vadd.f32 0.0, %v441
    %443 = vmatprep.mubr.f32.mxu0 0.0
    %444 = vmatmul.mubr.f32.gmra.mrb[0].mxu0 %v359
    %v445 = vpop.f32.mrb[0].mxu0
    %v446 = vadd.f32 0.0, %v445
    %v447 = vpop.f32.mrb[0].mxu0
    %v448 = vadd.f32 0.0, %v447
    %449 = vdwg.mxu0
    %450 = vmatprep.subr.mxu0 %v282
    %451 = vmatpush1.msra.mxu0 %v281
    %452 = vmatprep.subr.mxu0 %v284
    %453 = vmatpush1.msra.mxu0 %v283
    %454 = vmatprep.subr.mxu0 %v286
    %455 = vmatpush1.msra.mxu0 %v285
    %456 = vmatprep.subr.mxu0 %v288
    %457 = vmatpush1.msra.mxu0 %v287
    %458 = vmatprep.subr.mxu0 %v290
    %459 = vmatpush1.msra.mxu0 %v289
    %460 = vmatprep.subr.mxu0 %v292
    %461 = vmatpush1.msra.mxu0 %v291
    %462 = vmatprep.subr.mxu0 %v294
    %463 = vmatpush1.msra.mxu0 %v293
    %464 = vmatprep.subr.mxu0 %v296
    %465 = vmatpush1.msra.mxu0 %v295
    %466 = vmatprep.subr.mxu0 %v298
    %467 = vmatpush1.msra.mxu0 %v297
    %468 = vmatprep.subr.mxu0 %v300
    %469 = vmatpush1.msra.mxu0 %v299
    %470 = vmatprep.subr.mxu0 %v302
    %471 = vmatpush1.msra.mxu0 %v301
    %472 = vmatprep.subr.mxu0 %v304
    %473 = vmatpush1.msra.mxu0 %v303
    %474 = vmatprep.subr.mxu0 %v306
    %475 = vmatpush1.msra.mxu0 %v305
    %476 = vmatprep.subr.mxu0 %v308
    %477 = vmatpush1.msra.mxu0 %v307
    %478 = vmatprep.subr.mxu0 %v310
    %479 = vmatpush1.msra.mxu0 %v309
    %480 = vmatprep.subr.mxu0 %v312
    %481 = vmatpush1.msra.mxu0 %v311
    %482 = vmatprep.subr.mxu0 %v314
    %483 = vmatpush1.msra.mxu0 %v313
    %484 = vmatprep.subr.mxu0 %v316
    %485 = vmatpush1.msra.mxu0 %v315
    %486 = vmatprep.subr.mxu0 %v318
    %487 = vmatpush1.msra.mxu0 %v317
    %488 = vmatprep.subr.mxu0 %v320
    %489 = vmatpush1.msra.mxu0 %v319
    %490 = vmatprep.subr.mxu0 %v322
    %491 = vmatpush1.msra.mxu0 %v321
    %492 = vmatprep.subr.mxu0 %v324
    %493 = vmatpush1.msra.mxu0 %v323
    %494 = vmatprep.subr.mxu0 %v326
    %495 = vmatpush1.msra.mxu0 %v325
    %496 = vmatprep.subr.mxu0 %v328
    %497 = vmatpush1.msra.mxu0 %v327
    %498 = vmatprep.subr.mxu0 %v330
    %499 = vmatpush1.msra.mxu0 %v329
    %500 = vmatprep.subr.mxu0 %v332
    %501 = vmatpush1.msra.mxu0 %v331
    %502 = vmatprep.subr.mxu0 %v334
    %503 = vmatpush1.msra.mxu0 %v333
    %504 = vmatprep.subr.mxu0 %v336
    %505 = vmatpush1.msra.mxu0 %v335
    %506 = vmatprep.subr.mxu0 %v338
    %507 = vmatpush1.msra.mxu0 %v337
    %508 = vmatprep.subr.mxu0 %v340
    %509 = vmatpush1.msra.mxu0 %v339
    %510 = vmatprep.subr.mxu0 %v342
    %511 = vmatpush1.msra.mxu0 %v341
    %512 = vmatprep.subr.mxu0 %v344
    %513 = vmatpush1.msra.mxu0 %v343
    %514 = vmatprep.mubr.f32.mxu0 %v238
    %515 = vmatmul.mubr.f32.gmra.mrb[0].mxu0 %v237
    %v516 = vpop.f32.mrb[0].mxu0
    %v517 = vadd.f32 %v428, %v516
    %v518 = vpop.f32.mrb[0].mxu0
    %v519 = vadd.f32 %v430, %v518
    %520 = vmatprep.mubr.f32.mxu0 %v240
    %521 = vmatmul.mubr.f32.gmra.mrb[0].mxu0 %v239
    %v522 = vpop.f32.mrb[0].mxu0
    %v523 = vadd.f32 %v434, %v522
    %v524 = vpop.f32.mrb[0].mxu0
    %v525 = vadd.f32 %v436, %v524
    %526 = vmatprep.mubr.f32.mxu0 %v242
    %527 = vmatmul.mubr.f32.gmra.mrb[0].mxu0 %v241
    %v528 = vpop.f32.mrb[0].mxu0
    %v529 = vadd.f32 %v440, %v528
    %v530 = vpop.f32.mrb[0].mxu0
    %v531 = vadd.f32 %v442, %v530
    %532 = vmatprep.mubr.f32.mxu0 %v244
    %533 = vmatmul.mubr.f32.gmra.mrb[0].mxu0 %v243
    %v534 = vpop.f32.mrb[0].mxu0
    %v535 = vadd.f32 %v446, %v534
    %v536 = vpop.f32.mrb[0].mxu0
    %v537 = vadd.f32 %v448, %v536
    %538 = vdwg.mxu0
    %v539 = vld [vmem:[%s6] sm:$0x3]
    %v541 = vlaneseq
    %v542 = vshrl.u32 %v541, 7
    %v543 = vsub.s32 0, %v542
    %v544 = vrot.slane %v539, %v543
    %v545 = vlaneseq
    %v546 = vshrl.u32 %v545, 7
    %v547 = vsub.s32 1, %v546
    %v548 = vrot.slane %v539, %v547
    %v551 = vadd.f32 %v517, %v544
    %v552 = vadd.f32 %v519, %v548
    %v553 = vadd.f32 %v523, %v544
    %v554 = vadd.f32 %v525, %v548
    %v555 = vadd.f32 %v529, %v544
    %v556 = vadd.f32 %v531, %v548
    %v557 = vadd.f32 %v535, %v544
    %v558 = vadd.f32 %v537, %v548
    %v559 = vld [vmem:[%s7] sm:$0xff]
    %v560 = vld [vmem:[%s7 + $0x8] sm:$0xff]
    %v561 = vld [vmem:[%s7 + $0x10] sm:$0xff]
    %v562 = vld [vmem:[%s7 + $0x18] sm:$0xff]
    %v563 = vld [vmem:[%s7 + $0x20] sm:$0xff]
    %v564 = vld [vmem:[%s7 + $0x28] sm:$0xff]
    %v565 = vld [vmem:[%s7 + $0x30] sm:$0xff]
    %v566 = vld [vmem:[%s7 + $0x38] sm:$0xff]
    %v567 = vld [vmem:[%s7 + $0x40] sm:$0xff]
    %v568 = vld [vmem:[%s7 + $0x48] sm:$0xff]
    %v569 = vld [vmem:[%s7 + $0x50] sm:$0xff]
    %v570 = vld [vmem:[%s7 + $0x58] sm:$0xff]
    %v571 = vld [vmem:[%s7 + $0x60] sm:$0xff]
    %v572 = vld [vmem:[%s7 + $0x68] sm:$0xff]
    %v573 = vld [vmem:[%s7 + $0x70] sm:$0xff]
    %v574 = vld [vmem:[%s7 + $0x78] sm:$0xff]
    %v575 = vld [vmem:[%s7 + $0x80] sm:$0xff]
    %v576 = vld [vmem:[%s7 + $0x88] sm:$0xff]
    %v577 = vld [vmem:[%s7 + $0x90] sm:$0xff]
    %v578 = vld [vmem:[%s7 + $0x98] sm:$0xff]
    %v579 = vld [vmem:[%s7 + $0xa0] sm:$0xff]
    %v580 = vld [vmem:[%s7 + $0xa8] sm:$0xff]
    %v581 = vld [vmem:[%s7 + $0xb0] sm:$0xff]
    %v582 = vld [vmem:[%s7 + $0xb8] sm:$0xff]
    %v583 = vld [vmem:[%s7 + $0xc0] sm:$0xff]
    %v584 = vld [vmem:[%s7 + $0xc8] sm:$0xff]
    %v585 = vld [vmem:[%s7 + $0xd0] sm:$0xff]
    %v586 = vld [vmem:[%s7 + $0xd8] sm:$0xff]
    %v587 = vld [vmem:[%s7 + $0xe0] sm:$0xff]
    %v588 = vld [vmem:[%s7 + $0xe8] sm:$0xff]
    %v589 = vld [vmem:[%s7 + $0xf0] sm:$0xff]
    %v590 = vld [vmem:[%s7 + $0xf8] sm:$0xff]
    %v591 = vunpack.c.l.bf16 %v559
    %v592 = vunpack.c.h.bf16 %v559
    %v593 = vunpack.c.l.bf16 %v560
    %v594 = vunpack.c.h.bf16 %v560
    %v595 = vunpack.c.l.bf16 %v561
    %v596 = vunpack.c.h.bf16 %v561
    %v597 = vunpack.c.l.bf16 %v562
    %v598 = vunpack.c.h.bf16 %v562
    %v599 = vunpack.c.l.bf16 %v563
    %v600 = vunpack.c.h.bf16 %v563
    %v601 = vunpack.c.l.bf16 %v564
    %v602 = vunpack.c.h.bf16 %v564
    %v603 = vunpack.c.l.bf16 %v565
    %v604 = vunpack.c.h.bf16 %v565
    %v605 = vunpack.c.l.bf16 %v566
    %v606 = vunpack.c.h.bf16 %v566
    %v607 = vunpack.c.l.bf16 %v567
    %v608 = vunpack.c.h.bf16 %v567
    %v609 = vunpack.c.l.bf16 %v568
    %v610 = vunpack.c.h.bf16 %v568
    %v611 = vunpack.c.l.bf16 %v569
    %v612 = vunpack.c.h.bf16 %v569
    %v613 = vunpack.c.l.bf16 %v570
    %v614 = vunpack.c.h.bf16 %v570
    %v615 = vunpack.c.l.bf16 %v571
    %v616 = vunpack.c.h.bf16 %v571
    %v617 = vunpack.c.l.bf16 %v572
    %v618 = vunpack.c.h.bf16 %v572
    %v619 = vunpack.c.l.bf16 %v573
    %v620 = vunpack.c.h.bf16 %v573
    %v621 = vunpack.c.l.bf16 %v574
    %v622 = vunpack.c.h.bf16 %v574
    %v623 = vunpack.c.l.bf16 %v575
    %v624 = vunpack.c.h.bf16 %v575
    %v625 = vunpack.c.l.bf16 %v576
    %v626 = vunpack.c.h.bf16 %v576
    %v627 = vunpack.c.l.bf16 %v577
    %v628 = vunpack.c.h.bf16 %v577
    %v629 = vunpack.c.l.bf16 %v578
    %v630 = vunpack.c.h.bf16 %v578
    %v631 = vunpack.c.l.bf16 %v579
    %v632 = vunpack.c.h.bf16 %v579
    %v633 = vunpack.c.l.bf16 %v580
    %v634 = vunpack.c.h.bf16 %v580
    %v635 = vunpack.c.l.bf16 %v581
    %v636 = vunpack.c.h.bf16 %v581
    %v637 = vunpack.c.l.bf16 %v582
    %v638 = vunpack.c.h.bf16 %v582
    %v639 = vunpack.c.l.bf16 %v583
    %v640 = vunpack.c.h.bf16 %v583
    %v641 = vunpack.c.l.bf16 %v584
    %v642 = vunpack.c.h.bf16 %v584
    %v643 = vunpack.c.l.bf16 %v585
    %v644 = vunpack.c.h.bf16 %v585
    %v645 = vunpack.c.l.bf16 %v586
    %v646 = vunpack.c.h.bf16 %v586
    %v647 = vunpack.c.l.bf16 %v587
    %v648 = vunpack.c.h.bf16 %v587
    %v649 = vunpack.c.l.bf16 %v588
    %v650 = vunpack.c.h.bf16 %v588
    %v651 = vunpack.c.l.bf16 %v589
    %v652 = vunpack.c.h.bf16 %v589
    %v653 = vunpack.c.l.bf16 %v590
    %v654 = vunpack.c.h.bf16 %v590
    %v655 = vld [vmem:[%s8] sm:$0x3]
    %v657 = vlaneseq
    %v658 = vshrl.u32 %v657, 7
    %v659 = vsub.s32 0, %v658
    %v660 = vrot.slane %v655, %v659
    %v661 = vlaneseq
    %v662 = vshrl.u32 %v661, 7
    %v663 = vsub.s32 1, %v662
    %v664 = vrot.slane %v655, %v663
    %667 = vmatprep.subr.mxu0 %v592
    %668 = vmatpush1.msra.mxu0 %v591
    %669 = vmatprep.subr.mxu0 %v594
    %670 = vmatpush1.msra.mxu0 %v593
    %671 = vmatprep.subr.mxu0 %v596
    %672 = vmatpush1.msra.mxu0 %v595
    %673 = vmatprep.subr.mxu0 %v598
    %674 = vmatpush1.msra.mxu0 %v597
    %675 = vmatprep.subr.mxu0 %v600
    %676 = vmatpush1.msra.mxu0 %v599
    %677 = vmatprep.subr.mxu0 %v602
    %678 = vmatpush1.msra.mxu0 %v601
    %679 = vmatprep.subr.mxu0 %v604
    %680 = vmatpush1.msra.mxu0 %v603
    %681 = vmatprep.subr.mxu0 %v606
    %682 = vmatpush1.msra.mxu0 %v605
    %683 = vmatprep.subr.mxu0 %v608
    %684 = vmatpush1.msra.mxu0 %v607
    %685 = vmatprep.subr.mxu0 %v610
    %686 = vmatpush1.msra.mxu0 %v609
    %687 = vmatprep.subr.mxu0 %v612
    %688 = vmatpush1.msra.mxu0 %v611
    %689 = vmatprep.subr.mxu0 %v614
    %690 = vmatpush1.msra.mxu0 %v613
    %691 = vmatprep.subr.mxu0 %v616
    %692 = vmatpush1.msra.mxu0 %v615
    %693 = vmatprep.subr.mxu0 %v618
    %694 = vmatpush1.msra.mxu0 %v617
    %695 = vmatprep.subr.mxu0 %v620
    %696 = vmatpush1.msra.mxu0 %v619
    %697 = vmatprep.subr.mxu0 %v622
    %698 = vmatpush1.msra.mxu0 %v621
    %699 = vmatprep.subr.mxu0 %v624
    %700 = vmatpush1.msra.mxu0 %v623
    %701 = vmatprep.subr.mxu0 %v626
    %702 = vmatpush1.msra.mxu0 %v625
    %703 = vmatprep.subr.mxu0 %v628
    %704 = vmatpush1.msra.mxu0 %v627
    %705 = vmatprep.subr.mxu0 %v630
    %706 = vmatpush1.msra.mxu0 %v629
    %707 = vmatprep.subr.mxu0 %v632
    %708 = vmatpush1.msra.mxu0 %v631
    %709 = vmatprep.subr.mxu0 %v634
    %710 = vmatpush1.msra.mxu0 %v633
    %711 = vmatprep.subr.mxu0 %v636
    %712 = vmatpush1.msra.mxu0 %v635
    %713 = vmatprep.subr.mxu0 %v638
    %714 = vmatpush1.msra.mxu0 %v637
    %715 = vmatprep.subr.mxu0 %v640
    %716 = vmatpush1.msra.mxu0 %v639
    %717 = vmatprep.subr.mxu0 %v642
    %718 = vmatpush1.msra.mxu0 %v641
    %719 = vmatprep.subr.mxu0 %v644
    %720 = vmatpush1.msra.mxu0 %v643
    %721 = vmatprep.subr.mxu0 %v646
    %722 = vmatpush1.msra.mxu0 %v645
    %723 = vmatprep.subr.mxu0 %v648
    %724 = vmatpush1.msra.mxu0 %v647
    %725 = vmatprep.subr.mxu0 %v650
    %726 = vmatpush1.msra.mxu0 %v649
    %727 = vmatprep.subr.mxu0 %v652
    %728 = vmatpush1.msra.mxu0 %v651
    %729 = vmatprep.subr.mxu0 %v654
    %730 = vmatpush1.msra.mxu0 %v653
    %731 = vmatprep.mubr.f32.mxu0 %v238
    %732 = vmatmul.mubr.f32.gmra.mrb[0].mxu0 %v237
    %v733 = vpop.f32.mrb[0].mxu0
    %v734 = vadd.f32 %v660, %v733
    %v735 = vpop.f32.mrb[0].mxu0
    %v736 = vadd.f32 %v664, %v735
    %737 = vmatprep.mubr.f32.mxu0 %v240
    %738 = vmatmul.mubr.f32.gmra.mrb[0].mxu0 %v239
    %v739 = vpop.f32.mrb[0].mxu0
    %v740 = vadd.f32 %v660, %v739
    %v741 = vpop.f32.mrb[0].mxu0
    %v742 = vadd.f32 %v664, %v741
    %743 = vmatprep.mubr.f32.mxu0 %v242
    %744 = vmatmul.mubr.f32.gmra.mrb[0].mxu0 %v241
    %v745 = vpop.f32.mrb[0].mxu0
    %v746 = vadd.f32 %v660, %v745
    %v747 = vpop.f32.mrb[0].mxu0
    %v748 = vadd.f32 %v664, %v747
    %749 = vmatprep.mubr.f32.mxu0 %v244
    %750 = vmatmul.mubr.f32.gmra.mrb[0].mxu0 %v243
    %v751 = vpop.f32.mrb[0].mxu0
    %v752 = vadd.f32 %v660, %v751
    %v753 = vpop.f32.mrb[0].mxu0
    %v754 = vadd.f32 %v664, %v753
    %755 = vdwg.mxu0
    %756 = vmatprep.subr.mxu0 %v552
    %757 = vmatpush1.xpose.msra.mxu0 %v551
    %758 = vmatprep.subr.mxu0 %v554
    %759 = vmatpush1.xpose.msra.mxu0 %v553
    %760 = vmatprep.subr.mxu0 0.0
    %761 = vmatpush1.xpose.msra.mxu0 0.0
    %762 = vmatprep.subr.mxu0 0.0
    %763 = vmatpush1.xpose.msra.mxu0 0.0
    %764 = vmatprep.subr.mxu0 0.0
    %765 = vmatpush1.xpose.msra.mxu0 0.0
    %766 = vmatprep.subr.mxu0 0.0
    %767 = vmatpush1.xpose.msra.mxu0 0.0
    %768 = vmatprep.subr.mxu0 0.0
    %769 = vmatpush1.xpose.msra.mxu0 0.0
    %770 = vmatprep.subr.mxu0 0.0
    %771 = vmatpush1.xpose.msra.mxu0 0.0
    %772 = vmatprep.subr.mxu0 0.0
    %773 = vmatpush1.xpose.msra.mxu0 0.0
    %774 = vmatprep.subr.mxu0 0.0
    %775 = vmatpush1.xpose.msra.mxu0 0.0
    %776 = vmatprep.subr.mxu0 0.0
    %777 = vmatpush1.xpose.msra.mxu0 0.0
    %778 = vmatprep.subr.mxu0 0.0
    %779 = vmatpush1.xpose.msra.mxu0 0.0
    %780 = vmatprep.subr.mxu0 0.0
    %781 = vmatpush1.xpose.msra.mxu0 0.0
    %782 = vmatprep.subr.mxu0 0.0
    %783 = vmatpush1.xpose.msra.mxu0 0.0
    %784 = vmatprep.subr.mxu0 0.0
    %785 = vmatpush1.xpose.msra.mxu0 0.0
    %786 = vmatprep.subr.mxu0 0.0
    %787 = vmatpush1.xpose.msra.mxu0 0.0
    %788 = vmatprep.subr.mxu0 0.0
    %789 = vmatpush1.xpose.msra.mxu0 0.0
    %790 = vmatprep.subr.mxu0 0.0
    %791 = vmatpush1.xpose.msra.mxu0 0.0
    %792 = vmatprep.subr.mxu0 0.0
    %793 = vmatpush1.xpose.msra.mxu0 0.0
    %794 = vmatprep.subr.mxu0 0.0
    %795 = vmatpush1.xpose.msra.mxu0 0.0
    %796 = vmatprep.subr.mxu0 0.0
    %797 = vmatpush1.xpose.msra.mxu0 0.0
    %798 = vmatprep.subr.mxu0 0.0
    %799 = vmatpush1.xpose.msra.mxu0 0.0
    %800 = vmatprep.subr.mxu0 0.0
    %801 = vmatpush1.xpose.msra.mxu0 0.0
    %802 = vmatprep.subr.mxu0 0.0
    %803 = vmatpush1.xpose.msra.mxu0 0.0
    %804 = vmatprep.subr.mxu0 0.0
    %805 = vmatpush1.xpose.msra.mxu0 0.0
    %806 = vmatprep.subr.mxu0 0.0
    %807 = vmatpush1.xpose.msra.mxu0 0.0
    %808 = vmatprep.subr.mxu0 0.0
    %809 = vmatpush1.xpose.msra.mxu0 0.0
    %810 = vmatprep.subr.mxu0 0.0
    %811 = vmatpush1.xpose.msra.mxu0 0.0
    %812 = vmatprep.subr.mxu0 0.0
    %813 = vmatpush1.xpose.msra.mxu0 0.0
    %814 = vmatprep.subr.mxu0 0.0
    %815 = vmatpush1.xpose.msra.mxu0 0.0
    %816 = vmatprep.subr.mxu0 0.0
    %817 = vmatpush1.xpose.msra.mxu0 0.0
    %818 = vmatprep.subr.mxu0 0.0
    %819 = vmatpush1.xpose.msra.mxu0 0.0
    %820 = vmatprep.mubr.f32.mxu0 %v229
    %821 = vmatmul.mubr.f32.gmra.mrb[0].mxu0 %v227
    %v822 = vpop.f32.mrb[0].mxu0
    %v823 = vadd.f32 0.0, %v822
    %v824 = vpop.f32.mrb[0].mxu0
    %825 = vmatprep.mubr.f32.mxu0 %v235
    %826 = vmatmul.mubr.f32.gmra.mrb[0].mxu0 %v233
    %v827 = vpop.f32.mrb[0].mxu0
    %v828 = vadd.f32 0.0, %v827
    %v829 = vpop.f32.mrb[0].mxu0
    %830 = vdwg.mxu0
    %vm831 = vcmask 130048
    %v832 = vsel %vm831, %v823, -inf
    %833 = vmax.xlane.f32.xlu0 %v832
    %v834 = vpop.xlane.xlu0 %833
    %v835 = vsel %vm831, %v828, -inf
    %836 = vmax.xlane.f32.xlu0 %v835
    %v837 = vpop.xlane.xlu0 %836
    %v838 = vsub.f32 %v823, %v834
    %v839 = vsub.f32 %v828, %v837
    %v840 = vmul.f32 %v838, 1.442695
    %v841 = vpow.pop %v840
    %v842 = vmul.f32 %v839, 1.442695
    %v843 = vpow.pop %v842
    %v844 = vsel %vm831, %v841, 0.0
    %845 = vadd.xlane.f32.xlu0 %v844
    %v846 = vpop.xlane.xlu0 %845
    %v847 = vsel %vm831, %v843, 0.0
    %848 = vadd.xlane.f32.xlu0 %v847
    %v849 = vpop.xlane.xlu0 %848
    %v850 = vrcp.pop %v846
    %v851 = vrcp.pop %v849
    %v852 = vmul.f32 %v841, %v850
    %v853 = vmul.f32 %v843, %v851
    %854 = vmatprep.subr.mxu0 %v556
    %855 = vmatpush1.xpose.msra.mxu0 %v555
    %856 = vmatprep.subr.mxu0 %v558
    %857 = vmatpush1.xpose.msra.mxu0 %v557
    %858 = vmatprep.subr.mxu0 0.0
    %859 = vmatpush1.xpose.msra.mxu0 0.0
    %860 = vmatprep.subr.mxu0 0.0
    %861 = vmatpush1.xpose.msra.mxu0 0.0
    %862 = vmatprep.subr.mxu0 0.0
    %863 = vmatpush1.xpose.msra.mxu0 0.0
    %864 = vmatprep.subr.mxu0 0.0
    %865 = vmatpush1.xpose.msra.mxu0 0.0
    %866 = vmatprep.subr.mxu0 0.0
    %867 = vmatpush1.xpose.msra.mxu0 0.0
    %868 = vmatprep.subr.mxu0 0.0
    %869 = vmatpush1.xpose.msra.mxu0 0.0
    %870 = vmatprep.subr.mxu0 0.0
    %871 = vmatpush1.xpose.msra.mxu0 0.0
    %872 = vmatprep.subr.mxu0 0.0
    %873 = vmatpush1.xpose.msra.mxu0 0.0
    %874 = vmatprep.subr.mxu0 0.0
    %875 = vmatpush1.xpose.msra.mxu0 0.0
    %876 = vmatprep.subr.mxu0 0.0
    %877 = vmatpush1.xpose.msra.mxu0 0.0
    %878 = vmatprep.subr.mxu0 0.0
    %879 = vmatpush1.xpose.msra.mxu0 0.0
    %880 = vmatprep.subr.mxu0 0.0
    %881 = vmatpush1.xpose.msra.mxu0 0.0
    %882 = vmatprep.subr.mxu0 0.0
    %883 = vmatpush1.xpose.msra.mxu0 0.0
    %884 = vmatprep.subr.mxu0 0.0
    %885 = vmatpush1.xpose.msra.mxu0 0.0
    %886 = vmatprep.subr.mxu0 0.0
    %887 = vmatpush1.xpose.msra.mxu0 0.0
    %888 = vmatprep.subr.mxu0 0.0
    %889 = vmatpush1.xpose.msra.mxu0 0.0
    %890 = vmatprep.subr.mxu0 0.0
    %891 = vmatpush1.xpose.msra.mxu0 0.0
    %892 = vmatprep.subr.mxu0 0.0
    %893 = vmatpush1.xpose.msra.mxu0 0.0
    %894 = vmatprep.subr.mxu0 0.0
    %895 = vmatpush1.xpose.msra.mxu0 0.0
    %896 = vmatprep.subr.mxu0 0.0
    %897 = vmatpush1.xpose.msra.mxu0 0.0
    %898 = vmatprep.subr.mxu0 0.0
    %899 = vmatpush1.xpose.msra.mxu0 0.0
    %900 = vmatprep.subr.mxu0 0.0
    %901 = vmatpush1.xpose.msra.mxu0 0.0
    %902 = vmatprep.subr.mxu0 0.0
    %903 = vmatpush1.xpose.msra.mxu0 0.0
    %904 = vmatprep.subr.mxu0 0.0
    %905 = vmatpush1.xpose.msra.mxu0 0.0
    %906 = vmatprep.subr.mxu0 0.0
    %907 = vmatpush1.xpose.msra.mxu0 0.0
    %908 = vmatprep.subr.mxu0 0.0
    %909 = vmatpush1.xpose.msra.mxu0 0.0
    %910 = vmatprep.subr.mxu0 0.0
    %911 = vmatpush1.xpose.msra.mxu0 0.0
    %912 = vmatprep.subr.mxu0 0.0
    %913 = vmatpush1.xpose.msra.mxu0 0.0
    %914 = vmatprep.subr.mxu0 0.0
    %915 = vmatpush1.xpose.msra.mxu0 0.0
    %916 = vmatprep.subr.mxu0 0.0
    %917 = vmatpush1.xpose.msra.mxu0 0.0
    %918 = vmatprep.mubr.f32.mxu0 %v229
    %919 = vmatmul.mubr.f32.gmra.mrb[0].mxu0 %v227
    %v920 = vpop.f32.mrb[0].mxu0
    %v921 = vadd.f32 0.0, %v920
    %v922 = vpop.f32.mrb[0].mxu0
    %923 = vmatprep.mubr.f32.mxu0 %v235
    %924 = vmatmul.mubr.f32.gmra.mrb[0].mxu0 %v233
    %v925 = vpop.f32.mrb[0].mxu0
    %v926 = vadd.f32 0.0, %v925
    %v927 = vpop.f32.mrb[0].mxu0
    %928 = vdwg.mxu0
    %v929 = vsel %vm831, %v921, -inf
    %930 = vmax.xlane.f32.xlu0 %v929
    %v931 = vpop.xlane.xlu0 %930
    %v932 = vsel %vm831, %v926, -inf
    %933 = vmax.xlane.f32.xlu0 %v932
    %v934 = vpop.xlane.xlu0 %933
    %v935 = vsub.f32 %v921, %v931
    %v936 = vsub.f32 %v926, %v934
    %v937 = vmul.f32 %v935, 1.442695
    %v938 = vpow.pop %v937
    %v939 = vmul.f32 %v936, 1.442695
    %v940 = vpow.pop %v939
    %v941 = vsel %vm831, %v938, 0.0
    %942 = vadd.xlane.f32.xlu0 %v941
    %v943 = vpop.xlane.xlu0 %942
    %v944 = vsel %vm831, %v940, 0.0
    %945 = vadd.xlane.f32.xlu0 %v944
    %v946 = vpop.xlane.xlu0 %945
    %v947 = vrcp.pop %v943
    %v948 = vrcp.pop %v946
    %v949 = vmul.f32 %v938, %v947
    %v950 = vmul.f32 %v940, %v948
    %v952 = vsel %vm831, %v949, 0
    %v955 = vsel %vm831, %v950, 0
    %957 = vmatprep.subr.mxu0 %v748
    %958 = vmatpush1.msra.mxu0 %v746
    %959 = vmatprep.subr.mxu0 %v754
    %960 = vmatpush1.msra.mxu0 %v752
    %961 = vmatprep.subr.mxu0 0.0
    %962 = vmatpush1.msra.mxu0 0.0
    %963 = vmatprep.subr.mxu0 0.0
    %964 = vmatpush1.msra.mxu0 0.0
    %965 = vmatprep.subr.mxu0 0.0
    %966 = vmatpush1.msra.mxu0 0.0
    %967 = vmatprep.subr.mxu0 0.0
    %968 = vmatpush1.msra.mxu0 0.0
    %969 = vmatprep.subr.mxu0 0.0
    %970 = vmatpush1.msra.mxu0 0.0
    %971 = vmatprep.subr.mxu0 0.0
    %972 = vmatpush1.msra.mxu0 0.0
    %973 = vmatprep.subr.mxu0 0.0
    %974 = vmatpush1.msra.mxu0 0.0
    %975 = vmatprep.subr.mxu0 0.0
    %976 = vmatpush1.msra.mxu0 0.0
    %977 = vmatprep.subr.mxu0 0.0
    %978 = vmatpush1.msra.mxu0 0.0
    %979 = vmatprep.subr.mxu0 0.0
    %980 = vmatpush1.msra.mxu0 0.0
    %981 = vmatprep.subr.mxu0 0.0
    %982 = vmatpush1.msra.mxu0 0.0
    %983 = vmatprep.subr.mxu0 0.0
    %984 = vmatpush1.msra.mxu0 0.0
    %985 = vmatprep.subr.mxu0 0.0
    %986 = vmatpush1.msra.mxu0 0.0
    %987 = vmatprep.subr.mxu0 0.0
    %988 = vmatpush1.msra.mxu0 0.0
    %989 = vmatprep.subr.mxu0 0.0
    %990 = vmatpush1.msra.mxu0 0.0
    %991 = vmatprep.subr.mxu0 0.0
    %992 = vmatpush1.msra.mxu0 0.0
    %993 = vmatprep.subr.mxu0 0.0
    %994 = vmatpush1.msra.mxu0 0.0
    %995 = vmatprep.subr.mxu0 0.0
    %996 = vmatpush1.msra.mxu0 0.0
    %997 = vmatprep.subr.mxu0 0.0
    %998 = vmatpush1.msra.mxu0 0.0
    %999 = vmatprep.subr.mxu0 0.0
    %1000 = vmatpush1.msra.mxu0 0.0
    %1001 = vmatprep.subr.mxu0 0.0
    %1002 = vmatpush1.msra.mxu0 0.0
    %1003 = vmatprep.subr.mxu0 0.0
    %1004 = vmatpush1.msra.mxu0 0.0
    %1005 = vmatprep.subr.mxu0 0.0
    %1006 = vmatpush1.msra.mxu0 0.0
    %1007 = vmatprep.subr.mxu0 0.0
    %1008 = vmatpush1.msra.mxu0 0.0
    %1009 = vmatprep.subr.mxu0 0.0
    %1010 = vmatpush1.msra.mxu0 0.0
    %1011 = vmatprep.subr.mxu0 0.0
    %1012 = vmatpush1.msra.mxu0 0.0
    %1013 = vmatprep.subr.mxu0 0.0
    %1014 = vmatpush1.msra.mxu0 0.0
    %1015 = vmatprep.subr.mxu0 0.0
    %1016 = vmatpush1.msra.mxu0 0.0
    %1017 = vmatprep.subr.mxu0 0.0
    %1018 = vmatpush1.msra.mxu0 0.0
    %1019 = vmatprep.subr.mxu0 0.0
    %1020 = vmatpush1.msra.mxu0 0.0
    %1021 = vmatprep.mubr.f32.mxu0 0.0
    %1022 = vmatmul.mubr.f32.gmra.mrb[0].mxu0 %v952
    %v1023 = vpop.f32.mrb[0].mxu0
    %v1024 = vadd.f32 0.0, %v1023
    %v1025 = vpop.f32.mrb[0].mxu0
    %v1026 = vadd.f32 0.0, %v1025
    %1027 = vmatprep.mubr.f32.mxu0 0.0
    %1028 = vmatmul.mubr.f32.gmra.mrb[0].mxu0 %v955
    %v1029 = vpop.f32.mrb[0].mxu0
    %v1030 = vadd.f32 0.0, %v1029
    %v1031 = vpop.f32.mrb[0].mxu0
    %v1032 = vadd.f32 0.0, %v1031
    %1033 = vdwg.mxu0
    %v1035 = vsel %vm831, %v852, 0
    %v1038 = vsel %vm831, %v853, 0
    %1040 = vmatprep.subr.mxu0 %v736
    %1041 = vmatpush1.msra.mxu0 %v734
    %1042 = vmatprep.subr.mxu0 %v742
    %1043 = vmatpush1.msra.mxu0 %v740
    %1044 = vmatprep.subr.mxu0 0.0
    %1045 = vmatpush1.msra.mxu0 0.0
    %1046 = vmatprep.subr.mxu0 0.0
    %1047 = vmatpush1.msra.mxu0 0.0
    %1048 = vmatprep.subr.mxu0 0.0
    %1049 = vmatpush1.msra.mxu0 0.0
    %1050 = vmatprep.subr.mxu0 0.0
    %1051 = vmatpush1.msra.mxu0 0.0
    %1052 = vmatprep.subr.mxu0 0.0
    %1053 = vmatpush1.msra.mxu0 0.0
    %1054 = vmatprep.subr.mxu0 0.0
    %1055 = vmatpush1.msra.mxu0 0.0
    %1056 = vmatprep.subr.mxu0 0.0
    %1057 = vmatpush1.msra.mxu0 0.0
    %1058 = vmatprep.subr.mxu0 0.0
    %1059 = vmatpush1.msra.mxu0 0.0
    %1060 = vmatprep.subr.mxu0 0.0
    %1061 = vmatpush1.msra.mxu0 0.0
    %1062 = vmatprep.subr.mxu0 0.0
    %1063 = vmatpush1.msra.mxu0 0.0
    %1064 = vmatprep.subr.mxu0 0.0
    %1065 = vmatpush1.msra.mxu0 0.0
    %1066 = vmatprep.subr.mxu0 0.0
    %1067 = vmatpush1.msra.mxu0 0.0
    %1068 = vmatprep.subr.mxu0 0.0
    %1069 = vmatpush1.msra.mxu0 0.0
    %1070 = vmatprep.subr.mxu0 0.0
    %1071 = vmatpush1.msra.mxu0 0.0
    %1072 = vmatprep.subr.mxu0 0.0
    %1073 = vmatpush1.msra.mxu0 0.0
    %1074 = vmatprep.subr.mxu0 0.0
    %1075 = vmatpush1.msra.mxu0 0.0
    %1076 = vmatprep.subr.mxu0 0.0
    %1077 = vmatpush1.msra.mxu0 0.0
    %1078 = vmatprep.subr.mxu0 0.0
    %1079 = vmatpush1.msra.mxu0 0.0
    %1080 = vmatprep.subr.mxu0 0.0
    %1081 = vmatpush1.msra.mxu0 0.0
    %1082 = vmatprep.subr.mxu0 0.0
    %1083 = vmatpush1.msra.mxu0 0.0
    %1084 = vmatprep.subr.mxu0 0.0
    %1085 = vmatpush1.msra.mxu0 0.0
    %1086 = vmatprep.subr.mxu0 0.0
    %1087 = vmatpush1.msra.mxu0 0.0
    %1088 = vmatprep.subr.mxu0 0.0
    %1089 = vmatpush1.msra.mxu0 0.0
    %1090 = vmatprep.subr.mxu0 0.0
    %1091 = vmatpush1.msra.mxu0 0.0
    %1092 = vmatprep.subr.mxu0 0.0
    %1093 = vmatpush1.msra.mxu0 0.0
    %1094 = vmatprep.subr.mxu0 0.0
    %1095 = vmatpush1.msra.mxu0 0.0
    %1096 = vmatprep.subr.mxu0 0.0
    %1097 = vmatpush1.msra.mxu0 0.0
    %1098 = vmatprep.subr.mxu0 0.0
    %1099 = vmatpush1.msra.mxu0 0.0
    %1100 = vmatprep.subr.mxu0 0.0
    %1101 = vmatpush1.msra.mxu0 0.0
    %1102 = vmatprep.subr.mxu0 0.0
    %1103 = vmatpush1.msra.mxu0 0.0
    %1104 = vmatprep.mubr.f32.mxu0 0.0
    %1105 = vmatmul.mubr.f32.gmra.mrb[0].mxu0 %v1035
    %v1106 = vpop.f32.mrb[0].mxu0
    %v1107 = vadd.f32 %v1024, %v1106
    %v1108 = vpop.f32.mrb[0].mxu0
    %v1109 = vadd.f32 %v1026, %v1108
    %1110 = vmatprep.mubr.f32.mxu0 0.0
    %1111 = vmatmul.mubr.f32.gmra.mrb[0].mxu0 %v1038
    %v1112 = vpop.f32.mrb[0].mxu0
    %v1113 = vadd.f32 %v1030, %v1112
    %v1114 = vpop.f32.mrb[0].mxu0
    %v1115 = vadd.f32 %v1032, %v1114
    %1116 = vdwg.mxu0
    %v1117 = vmul.f32 %v1107, 0.5
    %v1118 = vmul.f32 %v1109, 0.5
    %v1119 = vmul.f32 %v1113, 0.5
    %v1120 = vmul.f32 %v1115, 0.5
    %v1121 = vld [vmem:[%s10] sm:$0xff]
    %v1122 = vld [vmem:[%s10 + $0x8] sm:$0xff]
    %v1123 = vld [vmem:[%s10 + $0x10] sm:$0xff]
    %v1124 = vld [vmem:[%s10 + $0x18] sm:$0xff]
    %v1125 = vld [vmem:[%s10 + $0x20] sm:$0xff]
    %v1126 = vld [vmem:[%s10 + $0x28] sm:$0xff]
    %v1127 = vld [vmem:[%s10 + $0x30] sm:$0xff]
    %v1128 = vld [vmem:[%s10 + $0x38] sm:$0xff]
    %v1129 = vld [vmem:[%s10 + $0x40] sm:$0xff]
    %v1130 = vld [vmem:[%s10 + $0x48] sm:$0xff]
    %v1131 = vld [vmem:[%s10 + $0x50] sm:$0xff]
    %v1132 = vld [vmem:[%s10 + $0x58] sm:$0xff]
    %v1133 = vld [vmem:[%s10 + $0x60] sm:$0xff]
    %v1134 = vld [vmem:[%s10 + $0x68] sm:$0xff]
    %v1135 = vld [vmem:[%s10 + $0x70] sm:$0xff]
    %v1136 = vld [vmem:[%s10 + $0x78] sm:$0xff]
    %v1137 = vld [vmem:[%s10 + $0x80] sm:$0xff]
    %v1138 = vld [vmem:[%s10 + $0x88] sm:$0xff]
    %v1139 = vld [vmem:[%s10 + $0x90] sm:$0xff]
    %v1140 = vld [vmem:[%s10 + $0x98] sm:$0xff]
    %v1141 = vld [vmem:[%s10 + $0xa0] sm:$0xff]
    %v1142 = vld [vmem:[%s10 + $0xa8] sm:$0xff]
    %v1143 = vld [vmem:[%s10 + $0xb0] sm:$0xff]
    %v1144 = vld [vmem:[%s10 + $0xb8] sm:$0xff]
    %v1145 = vld [vmem:[%s10 + $0xc0] sm:$0xff]
    %v1146 = vld [vmem:[%s10 + $0xc8] sm:$0xff]
    %v1147 = vld [vmem:[%s10 + $0xd0] sm:$0xff]
    %v1148 = vld [vmem:[%s10 + $0xd8] sm:$0xff]
    %v1149 = vld [vmem:[%s10 + $0xe0] sm:$0xff]
    %v1150 = vld [vmem:[%s10 + $0xe8] sm:$0xff]
    %v1151 = vld [vmem:[%s10 + $0xf0] sm:$0xff]
    %v1152 = vld [vmem:[%s10 + $0xf8] sm:$0xff]
    %v1153 = vunpack.c.l.bf16 %v1121
    %v1154 = vunpack.c.h.bf16 %v1121
    %v1155 = vunpack.c.l.bf16 %v1122
    %v1156 = vunpack.c.h.bf16 %v1122
    %v1157 = vunpack.c.l.bf16 %v1123
    %v1158 = vunpack.c.h.bf16 %v1123
    %v1159 = vunpack.c.l.bf16 %v1124
    %v1160 = vunpack.c.h.bf16 %v1124
    %v1161 = vunpack.c.l.bf16 %v1125
    %v1162 = vunpack.c.h.bf16 %v1125
    %v1163 = vunpack.c.l.bf16 %v1126
    %v1164 = vunpack.c.h.bf16 %v1126
    %v1165 = vunpack.c.l.bf16 %v1127
    %v1166 = vunpack.c.h.bf16 %v1127
    %v1167 = vunpack.c.l.bf16 %v1128
    %v1168 = vunpack.c.h.bf16 %v1128
    %v1169 = vunpack.c.l.bf16 %v1129
    %v1170 = vunpack.c.h.bf16 %v1129
    %v1171 = vunpack.c.l.bf16 %v1130
    %v1172 = vunpack.c.h.bf16 %v1130
    %v1173 = vunpack.c.l.bf16 %v1131
    %v1174 = vunpack.c.h.bf16 %v1131
    %v1175 = vunpack.c.l.bf16 %v1132
    %v1176 = vunpack.c.h.bf16 %v1132
    %v1177 = vunpack.c.l.bf16 %v1133
    %v1178 = vunpack.c.h.bf16 %v1133
    %v1179 = vunpack.c.l.bf16 %v1134
    %v1180 = vunpack.c.h.bf16 %v1134
    %v1181 = vunpack.c.l.bf16 %v1135
    %v1182 = vunpack.c.h.bf16 %v1135
    %v1183 = vunpack.c.l.bf16 %v1136
    %v1184 = vunpack.c.h.bf16 %v1136
    %v1185 = vunpack.c.l.bf16 %v1137
    %v1186 = vunpack.c.h.bf16 %v1137
    %v1187 = vunpack.c.l.bf16 %v1138
    %v1188 = vunpack.c.h.bf16 %v1138
    %v1189 = vunpack.c.l.bf16 %v1139
    %v1190 = vunpack.c.h.bf16 %v1139
    %v1191 = vunpack.c.l.bf16 %v1140
    %v1192 = vunpack.c.h.bf16 %v1140
    %v1193 = vunpack.c.l.bf16 %v1141
    %v1194 = vunpack.c.h.bf16 %v1141
    %v1195 = vunpack.c.l.bf16 %v1142
    %v1196 = vunpack.c.h.bf16 %v1142
    %v1197 = vunpack.c.l.bf16 %v1143
    %v1198 = vunpack.c.h.bf16 %v1143
    %v1199 = vunpack.c.l.bf16 %v1144
    %v1200 = vunpack.c.h.bf16 %v1144
    %v1201 = vunpack.c.l.bf16 %v1145
    %v1202 = vunpack.c.h.bf16 %v1145
    %v1203 = vunpack.c.l.bf16 %v1146
    %v1204 = vunpack.c.h.bf16 %v1146
    %v1205 = vunpack.c.l.bf16 %v1147
    %v1206 = vunpack.c.h.bf16 %v1147
    %v1207 = vunpack.c.l.bf16 %v1148
    %v1208 = vunpack.c.h.bf16 %v1148
    %v1209 = vunpack.c.l.bf16 %v1149
    %v1210 = vunpack.c.h.bf16 %v1149
    %v1211 = vunpack.c.l.bf16 %v1150
    %v1212 = vunpack.c.h.bf16 %v1150
    %v1213 = vunpack.c.l.bf16 %v1151
    %v1214 = vunpack.c.h.bf16 %v1151
    %v1215 = vunpack.c.l.bf16 %v1152
    %v1216 = vunpack.c.h.bf16 %v1152
    %v1217 = vld [vmem:[%s11] sm:$0x3]
    %v1219 = vlaneseq
    %v1220 = vshrl.u32 %v1219, 7
    %v1221 = vsub.s32 0, %v1220
    %v1222 = vrot.slane %v1217, %v1221
    %v1223 = vlaneseq
    %v1224 = vshrl.u32 %v1223, 7
    %v1225 = vsub.s32 1, %v1224
    %v1226 = vrot.slane %v1217, %v1225
    %1229 = vmatprep.subr.mxu0 %v1154
    %1230 = vmatpush1.msra.mxu0 %v1153
    %1231 = vmatprep.subr.mxu0 %v1156
    %1232 = vmatpush1.msra.mxu0 %v1155
    %1233 = vmatprep.subr.mxu0 %v1158
    %1234 = vmatpush1.msra.mxu0 %v1157
    %1235 = vmatprep.subr.mxu0 %v1160
    %1236 = vmatpush1.msra.mxu0 %v1159
    %1237 = vmatprep.subr.mxu0 %v1162
    %1238 = vmatpush1.msra.mxu0 %v1161
    %1239 = vmatprep.subr.mxu0 %v1164
    %1240 = vmatpush1.msra.mxu0 %v1163
    %1241 = vmatprep.subr.mxu0 %v1166
    %1242 = vmatpush1.msra.mxu0 %v1165
    %1243 = vmatprep.subr.mxu0 %v1168
    %1244 = vmatpush1.msra.mxu0 %v1167
    %1245 = vmatprep.subr.mxu0 %v1170
    %1246 = vmatpush1.msra.mxu0 %v1169
    %1247 = vmatprep.subr.mxu0 %v1172
    %1248 = vmatpush1.msra.mxu0 %v1171
    %1249 = vmatprep.subr.mxu0 %v1174
    %1250 = vmatpush1.msra.mxu0 %v1173
    %1251 = vmatprep.subr.mxu0 %v1176
    %1252 = vmatpush1.msra.mxu0 %v1175
    %1253 = vmatprep.subr.mxu0 %v1178
    %1254 = vmatpush1.msra.mxu0 %v1177
    %1255 = vmatprep.subr.mxu0 %v1180
    %1256 = vmatpush1.msra.mxu0 %v1179
    %1257 = vmatprep.subr.mxu0 %v1182
    %1258 = vmatpush1.msra.mxu0 %v1181
    %1259 = vmatprep.subr.mxu0 %v1184
    %1260 = vmatpush1.msra.mxu0 %v1183
    %1261 = vmatprep.subr.mxu0 %v1186
    %1262 = vmatpush1.msra.mxu0 %v1185
    %1263 = vmatprep.subr.mxu0 %v1188
    %1264 = vmatpush1.msra.mxu0 %v1187
    %1265 = vmatprep.subr.mxu0 %v1190
    %1266 = vmatpush1.msra.mxu0 %v1189
    %1267 = vmatprep.subr.mxu0 %v1192
    %1268 = vmatpush1.msra.mxu0 %v1191
    %1269 = vmatprep.subr.mxu0 %v1194
    %1270 = vmatpush1.msra.mxu0 %v1193
    %1271 = vmatprep.subr.mxu0 %v1196
    %1272 = vmatpush1.msra.mxu0 %v1195
    %1273 = vmatprep.subr.mxu0 %v1198
    %1274 = vmatpush1.msra.mxu0 %v1197
    %1275 = vmatprep.subr.mxu0 %v1200
    %1276 = vmatpush1.msra.mxu0 %v1199
    %1277 = vmatprep.subr.mxu0 %v1202
    %1278 = vmatpush1.msra.mxu0 %v1201
    %1279 = vmatprep.subr.mxu0 %v1204
    %1280 = vmatpush1.msra.mxu0 %v1203
    %1281 = vmatprep.subr.mxu0 %v1206
    %1282 = vmatpush1.msra.mxu0 %v1205
    %1283 = vmatprep.subr.mxu0 %v1208
    %1284 = vmatpush1.msra.mxu0 %v1207
    %1285 = vmatprep.subr.mxu0 %v1210
    %1286 = vmatpush1.msra.mxu0 %v1209
    %1287 = vmatprep.subr.mxu0 %v1212
    %1288 = vmatpush1.msra.mxu0 %v1211
    %1289 = vmatprep.subr.mxu0 %v1214
    %1290 = vmatpush1.msra.mxu0 %v1213
    %1291 = vmatprep.subr.mxu0 %v1216
    %1292 = vmatpush1.msra.mxu0 %v1215
    %1293 = vmatprep.mubr.f32.mxu0 %v1118
    %1294 = vmatmul.mubr.f32.gmra.mrb[0].mxu0 %v1117
    %v1295 = vpop.f32.mrb[0].mxu0
    %v1296 = vadd.f32 %v1222, %v1295
    %v1297 = vpop.f32.mrb[0].mxu0
    %v1298 = vadd.f32 %v1226, %v1297
    %1299 = vmatprep.mubr.f32.mxu0 %v1120
    %1300 = vmatmul.mubr.f32.gmra.mrb[0].mxu0 %v1119
    %v1301 = vpop.f32.mrb[0].mxu0
    %v1302 = vadd.f32 %v1222, %v1301
    %v1303 = vpop.f32.mrb[0].mxu0
    %v1304 = vadd.f32 %v1226, %v1303
    %1305 = vdwg.mxu0
    %v1306 = vadd.f32 %v48, %v1296
    %v1307 = vadd.f32 %v49, %v1298
    %v1308 = vadd.f32 %v50, %v1302
    %v1309 = vadd.f32 %v51, %v1304
    %v1310 = vadd.f32 %v1306, %v1307
    %1311 = vadd.xlane.f32.xlu0 %v1310
    %v1312 = vpop.xlane.xlu0 %1311
    %v1313 = vadd.f32 %v1308, %v1309
    %1314 = vadd.xlane.f32.xlu0 %v1313
    %v1315 = vpop.xlane.xlu0 %1314
    %v1316 = vrcp.pop 256.0
    %v1317 = vmul.f32 %v1312, %v1316
    %v1318 = vmul.f32 %v1315, %v1316
    %v1319 = vsub.f32 %v1306, %v1317
    %v1320 = vsub.f32 %v1307, %v1317
    %v1321 = vsub.f32 %v1308, %v1318
    %v1322 = vsub.f32 %v1309, %v1318
    %v1323 = vmul.f32 %v1319, %v1319
    %v1324 = vmul.f32 %v1320, %v1320
    %v1325 = vmul.f32 %v1321, %v1321
    %v1326 = vmul.f32 %v1322, %v1322
    %v1327 = vadd.f32 %v1323, %v1324
    %1328 = vadd.xlane.f32.xlu0 %v1327
    %v1329 = vpop.xlane.xlu0 %1328
    %v1330 = vadd.f32 %v1325, %v1326
    %1331 = vadd.xlane.f32.xlu0 %v1330
    %v1332 = vpop.xlane.xlu0 %1331
    %v1333 = vmul.f32 %v1329, %v1316
    %v1334 = vmul.f32 %v1332, %v1316
    %v1335 = vadd.f32 %v1333, 1e-05
    %v1336 = vadd.f32 %v1334, 1e-05
    %v1337 = vrsqrt.pop %v1335
    %v1338 = vrsqrt.pop %v1336
    %v1339 = vmul.f32 %v1319, %v1337
    %v1340 = vmul.f32 %v1320, %v1337
    %v1341 = vmul.f32 %v1321, %v1338
    %v1342 = vmul.f32 %v1322, %v1338
    %v1343 = vld [vmem:[%s12] sm:$0x3]
    %v1345 = vlaneseq
    %v1346 = vshrl.u32 %v1345, 7
    %v1347 = vsub.s32 0, %v1346
    %v1348 = vrot.slane %v1343, %v1347
    %v1349 = vlaneseq
    %v1350 = vshrl.u32 %v1349, 7
    %v1351 = vsub.s32 1, %v1350
    %v1352 = vrot.slane %v1343, %v1351
    %v1355 = vmul.f32 %v1339, %v1348
    %v1356 = vmul.f32 %v1340, %v1352
    %v1357 = vmul.f32 %v1341, %v1348
    %v1358 = vmul.f32 %v1342, %v1352
    %v1359 = vld [vmem:[%s13] sm:$0x3]
    %v1361 = vlaneseq
    %v1362 = vshrl.u32 %v1361, 7
    %v1363 = vsub.s32 0, %v1362
    %v1364 = vrot.slane %v1359, %v1363
    %v1365 = vlaneseq
    %v1366 = vshrl.u32 %v1365, 7
    %v1367 = vsub.s32 1, %v1366
    %v1368 = vrot.slane %v1359, %v1367
    %v1371 = vadd.f32 %v1355, %v1364
    %v1372 = vadd.f32 %v1356, %v1368
    %v1373 = vadd.f32 %v1357, %v1364
    %v1374 = vadd.f32 %v1358, %v1368
    %1375 = vst [vmem:[#allocation2] sm:$0xff] %v1371
    %1376 = vst [vmem:[#allocation2 + $0x8] sm:$0xff] %v1372
    %1377 = vst [vmem:[#allocation2 + $0x10] sm:$0xff] %v1373
    %1378 = vst [vmem:[#allocation2 + $0x18] sm:$0xff] %v1374
    // Predicated region
    $region58: #{cross_vehicle_attention_fuse.1} parent=1 // pred_check
      _
    $region59: #{cross_vehicle_attention_fuse.1} parent=1 // pred_check_branch
      %1380 = sbr.rel (0) target = $region61
    $region60: #{cross_vehicle_attention_fuse.1} parent=1 // pred_region
      %s1382 = ssub.s32 512, 512
      %1383 = vsyncadd [#allocation3], %s1382
      %s1384 = sshll.u32 [#allocation2], 4
      %s1385 = int_to_ptr.vmem [resolvable:$true] %s1384
      %1390 = dma.vmem_to_hbm [thread:$0]  %s1385, 512, %s14, [#allocation3], 256, 256, 16
    $region61: #{cross_vehicle_attention_fuse.1} parent=1 // pred_fallthru
      _
    // Predicated region
    $region62: #{cross_vehicle_attention_fuse.1} parent=1 // pred_check
      _
    $region63: #{cross_vehicle_attention_fuse.1} parent=1 // pred_check_branch
      %1392 = sbr.rel (0) target = $region65
    $region64: #{cross_vehicle_attention_fuse.1} parent=1 // pred_region
      %1393 = dma.done [#allocation3], 512
    $region65: #{cross_vehicle_attention_fuse.1} parent=1 // pred_fallthru
      _
    %1394 = vsyncpa [#allocation3], 1

</llo_original>
